<compile_context>
chip_gen: v5e
topology: v5e:2x2
jax: 0.10.0
libtpu: 0.0.40
codegen_flags: <defaults>
</compile_context>

<pallas_src>
import functools

import jax
import jax.numpy as jnp
from jax import lax
from jax.experimental import pallas as pl
from jax.experimental.pallas import tpu as pltpu


def _basic_block_kernel(x_ref, w1_ref, s1_ref, b1_ref, w2_ref, s2_ref, b2_ref,
                        watt_ref, out_ref, z_ref, xp1_ref, xp2_ref, *, spatial_w):
    """One batch sample, lane-dense (C, H*W) layout:
    conv3x3 -> BN -> ReLU -> conv3x3 -> BN -> DeepExplanation gating ->
    residual add -> ReLU.  Also emits the attention logits z (the deep prediction
    matmul is done in the wrapper)."""
    _, C, HW = x_ref.shape
    W = spatial_w
    pad = W + 1                      # halo width; >= W so any row-OOB tap lands in it

    x = x_ref[0]                                              # (C, HW), lane-dense
    # Column index of every spatial position (for left/right boundary masks).
    col = lax.broadcasted_iota(jnp.int32, (1, HW), 1) % W     # (1, HW), broadcasts

    def conv3x3(xp_ref, inp, w_ref):
        """3x3 conv, stride 1, pad 1, on lane-dense (Ci, HW) input.

        The input is staged into a flat buffer with a zero halo of width W+1 on each
        side; each of the 9 taps is then a (Ci, HW) lane-slice read at a constant
        offset followed by a (Co, Ci) @ (Ci, HW) MXU matmul.  Row out-of-bounds taps
        read the zero halo; column out-of-bounds positions are masked with `col`."""
        Ci = inp.shape[0]
        Co = w_ref.shape[1]
        # Zero only the halo strips (interior fully overwritten below). Re-done every
        # grid step so it is safe under megacore grid splitting.
        xp_ref[:, :pad] = jnp.zeros((Ci, pad), jnp.float32)
        xp_ref[:, pad + HW:] = jnp.zeros((Ci, pad), jnp.float32)
        xp_ref[:, pad:pad + HW] = inp
        acc = jnp.zeros((Co, HW), jnp.float32)
        for dy in range(3):
            for dx in range(3):
                start = pad + (dy - 1) * W + (dx - 1)
                tap = xp_ref[:, start:start + HW]             # (Ci, HW) lane-slice load
                if dx == 0:                                   # needs source col-1 >= 0
                    tap = jnp.where(col >= 1, tap, 0.0)
                elif dx == 2:                                 # needs source col+1 <= W-1
                    tap = jnp.where(col <= W - 2, tap, 0.0)
                acc = acc + jnp.dot(w_ref[dy * 3 + dx], tap,
                                    preferred_element_type=jnp.float32)
        return acc                                            # (Co, HW), lane-dense

    # conv1 -> bn1 -> relu
    o1 = conv3x3(xp1_ref, x, w1_ref)
    o1 = jnp.maximum(o1 * s1_ref[...] + b1_ref[...], 0.0)

    # conv2 -> bn2
    o2 = conv3x3(xp2_ref, o1, w2_ref)
    o2 = o2 * s2_ref[...] + b2_ref[...]

    # DeepExplanation: global average pools -> relu -> W -> sigmoid gate.
    inv_hw = 1.0 / HW
    id_pool = jnp.sum(x, axis=1, keepdims=True) * inv_hw      # (C, 1)
    out_pool = jnp.sum(o2, axis=1, keepdims=True) * inv_hw    # (C, 1)
    s = jnp.maximum(id_pool + out_pool, 0.0)                  # (C, 1)
    z = jnp.dot(watt_ref[...], s, preferred_element_type=jnp.float32)  # (C, 1)
    gate = 1.0 / (1.0 + jnp.exp(-z))                          # (C, 1)

    res = jnp.maximum(o2 + x * gate, 0.0)                     # (C, HW), lane-dense
    out_ref[0] = res.astype(out_ref.dtype)
    z_ref[0] = z.astype(z_ref.dtype)


def basic_block_forward(x_nchw, preds, params):
    """Mirrors BasicBlock.forward((x, preds)) with downsample=None (Cin == Cout)."""
    N, Cin, H, W = x_nchw.shape
    Cout = params["w1"].shape[0]
    HW = H * W
    eps = 1e-5

    # Lane-dense layout: keep NCHW, just flatten spatial dims (free, row-major).
    x_flat = x_nchw.reshape(N, Cin, HW).astype(jnp.float32)

    # Conv weights OIHW -> tap-major (9, Cout, Cin) with tap index t = dy*3 + dx.
    w1_taps = jnp.transpose(params["w1"], (2, 3, 0, 1)).reshape(9, Cout, Cin)
    w2_taps = jnp.transpose(params["w2"], (2, 3, 0, 1)).reshape(9, Cout, Cout)

    def fold_bn(gamma, beta, mean, var):
        scale = gamma * lax.rsqrt(var + eps)
        bias = beta - mean * scale
        return scale.reshape(-1, 1), bias.reshape(-1, 1)      # (C, 1) columns

    s1, b1 = fold_bn(params["bn1_gamma"], params["bn1_beta"],
                     params["bn1_mean"], params["bn1_var"])
    s2, b2 = fold_bn(params["bn2_gamma"], params["bn2_beta"],
                     params["bn2_mean"], params["bn2_var"])
    watt = params["W_w"].astype(jnp.float32)                  # z = W_w @ s (column form)

    grid_spec = pltpu.PrefetchScalarGridSpec(
        num_scalar_prefetch=0,
        grid=(N,),
        in_specs=[
            pl.BlockSpec((1, Cin, HW), lambda b: (b, 0, 0)),      # x (lane-dense)
            pl.BlockSpec((9, Cout, Cin), lambda b: (0, 0, 0)),    # conv1 tap weights
            pl.BlockSpec((Cout, 1), lambda b: (0, 0)),            # bn1 scale
            pl.BlockSpec((Cout, 1), lambda b: (0, 0)),            # bn1 bias
            pl.BlockSpec((9, Cout, Cout), lambda b: (0, 0, 0)),   # conv2 tap weights
            pl.BlockSpec((Cout, 1), lambda b: (0, 0)),            # bn2 scale
            pl.BlockSpec((Cout, 1), lambda b: (0, 0)),            # bn2 bias
            pl.BlockSpec((Cout, Cout), lambda b: (0, 0)),         # W_w
        ],
        out_specs=[
            pl.BlockSpec((1, Cout, HW), lambda b: (b, 0, 0)),     # block output (lane-dense)
            pl.BlockSpec((1, Cout, 1), lambda b: (b, 0, 0)),      # attention logits z
        ],
        scratch_shapes=[
            pltpu.VMEM((Cin, HW + 2 * (W + 1)), jnp.float32),     # conv1 flat staging + halo
            pltpu.VMEM((Cout, HW + 2 * (W + 1)), jnp.float32),    # conv2 flat staging + halo
        ],
    )

    out_flat, z3 = pl.pallas_call(
        functools.partial(_basic_block_kernel, spatial_w=W),
        out_shape=(
            jax.ShapeDtypeStruct((N, Cout, HW), jnp.float32),
            jax.ShapeDtypeStruct((N, Cout, 1), jnp.float32),
        ),
        grid_spec=grid_spec,
        compiler_params=pltpu.CompilerParams(
            dimension_semantics=("parallel",)),
    )(x_flat, w1_taps, s1, b1, w2_taps, s2, b2, watt)

    out_nchw = out_flat.reshape(N, Cout, H, W)                    # free reshape back
    z = z3[:, :, 0]                                               # (N, C)
    # Deep prediction: tiny (N,C)@(C,ncls) kept in the wrapper so the kernel avoids
    # a degenerate 11-lane masked store and an extra MXU op per grid step.
    pred = z @ params["pred_w"].T
    return out_nchw, preds + [pred]


# ------------------- pure-JAX reference (NCHW, mirrors torch) -------------------
def _ref_forward(x, params):
    eps = 1e-5

    def conv(x, w):
        return lax.conv_general_dilated(
            x, w, window_strides=(1, 1), padding=((1, 1), (1, 1)),
            dimension_numbers=("NCHW", "OIHW", "NCHW"))

    def bn(x, g, b, m, v):
        return (x - m[None, :, None, None]) * lax.rsqrt(v + eps)[None, :, None, None] \
            * g[None, :, None, None] + b[None, :, None, None]

    out = conv(x, params["w1"])
    out = jax.nn.relu(bn(out, params["bn1_gamma"], params["bn1_beta"],
                         params["bn1_mean"], params["bn1_var"]))
    out = conv(out, params["w2"])
    out = bn(out, params["bn2_gamma"], params["bn2_beta"],
             params["bn2_mean"], params["bn2_var"])
    identity = x
    xs = jnp.mean(identity, axis=(2, 3)) + jnp.mean(out, axis=(2, 3))
    xs = jax.nn.relu(xs)
    z = xs @ params["W_w"].T
    gate = jax.nn.sigmoid(z)
    gated = identity * gate[:, :, None, None]
    pred = z @ params["pred_w"].T
    return jax.nn.relu(out + gated), pred


if __name__ == "__main__":
    N, C, Hs, Ws, NUM_CLASSES = 2, 4, 16, 16, 11  # in_channels == out_channels, stride=1

    key = jax.random.PRNGKey(0)
    ks = jax.random.split(key, 10)
    params = {
        "w1": 0.2 * jax.random.normal(ks[0], (C, C, 3, 3), jnp.float32),   # OIHW
        "w2": 0.2 * jax.random.normal(ks[1], (C, C, 3, 3), jnp.float32),
        "bn1_gamma": 1.0 + 0.1 * jax.random.normal(ks[2], (C,), jnp.float32),
        "bn1_beta": 0.1 * jax.random.normal(ks[3], (C,), jnp.float32),
        "bn1_mean": 0.1 * jax.random.normal(ks[4], (C,), jnp.float32),
        "bn1_var": jnp.abs(jax.random.normal(ks[5], (C,), jnp.float32)) + 0.5,
        "bn2_gamma": jnp.ones((C,), jnp.float32),
        "bn2_beta": jnp.zeros((C,), jnp.float32),
        "bn2_mean": jnp.zeros((C,), jnp.float32),
        "bn2_var": jnp.ones((C,), jnp.float32),
        "W_w": 0.3 * jax.random.normal(ks[6], (C, C), jnp.float32),              # nn.Linear(C, C)
        "pred_w": 0.3 * jax.random.normal(ks[7], (NUM_CLASSES, C), jnp.float32),  # nn.Linear(C, ncls)
    }

    x = jax.random.normal(ks[8], (N, C, Hs, Ws), jnp.float32)
    preds = []

    out, preds_out = basic_block_forward(x, preds, params)
    out = jax.block_until_ready(out)
    pred = jax.block_until_ready(preds_out[-1])

    # correctness check against pure-JAX reference
    ref_out, ref_pred = _ref_forward(x, params)
    assert out.shape == (N, C, Hs, Ws) and pred.shape == (N, NUM_CLASSES)
    assert jnp.allclose(out, ref_out, atol=1e-4, rtol=1e-4), "output mismatch"
    assert jnp.allclose(pred, ref_pred, atol=1e-4, rtol=1e-4), "deep_pred mismatch"

    print("KERNEL_OK")
</pallas_src>

<mosaic_0001>
module attributes {stable_mosaic.version = 11 : i64} {
  func.func @_basic_block_kernel(%arg0: i32, %arg1: memref<1x4x256xf32, #tpu.memory_space<vmem>>, %arg2: memref<9x4x4xf32, #tpu.memory_space<vmem>>, %arg3: memref<4x1xf32, #tpu.memory_space<vmem>>, %arg4: memref<4x1xf32, #tpu.memory_space<vmem>>, %arg5: memref<9x4x4xf32, #tpu.memory_space<vmem>>, %arg6: memref<4x1xf32, #tpu.memory_space<vmem>>, %arg7: memref<4x1xf32, #tpu.memory_space<vmem>>, %arg8: memref<4x4xf32, #tpu.memory_space<vmem>>, %arg9: memref<1x4x256xf32, #tpu.memory_space<vmem>>, %arg10: memref<1x4x1xf32, #tpu.memory_space<vmem>>, %arg11: memref<4x290xf32, #tpu.memory_space<vmem>>, %arg12: memref<4x290xf32, #tpu.memory_space<vmem>>) attributes {dimension_semantics = [#tpu.dimension_semantics<parallel>], iteration_bounds = array<i64: 2>, scalar_prefetch = 0 : i64, scratch_operands = 2 : i64, tpu.core_type = #tpu.core_type<tc>, window_params = [{transform_indices = @transform_0, window_bounds = array<i64: 1, 4, 256>}, {pipeline_mode = #tpu.pipeline_mode<synchronous>, transform_indices = @transform_1, window_bounds = array<i64: 9, 4, 4>}, {pipeline_mode = #tpu.pipeline_mode<synchronous>, transform_indices = @transform_2, window_bounds = array<i64: 4, 1>}, {pipeline_mode = #tpu.pipeline_mode<synchronous>, transform_indices = @transform_3, window_bounds = array<i64: 4, 1>}, {pipeline_mode = #tpu.pipeline_mode<synchronous>, transform_indices = @transform_4, window_bounds = array<i64: 9, 4, 4>}, {pipeline_mode = #tpu.pipeline_mode<synchronous>, transform_indices = @transform_5, window_bounds = array<i64: 4, 1>}, {pipeline_mode = #tpu.pipeline_mode<synchronous>, transform_indices = @transform_6, window_bounds = array<i64: 4, 1>}, {pipeline_mode = #tpu.pipeline_mode<synchronous>, transform_indices = @transform_7, window_bounds = array<i64: 4, 4>}, {transform_indices = @transform_8, window_bounds = array<i64: 1, 4, 256>}, {transform_indices = @transform_9, window_bounds = array<i64: 1, 4, 1>}]} {
    %c0 = arith.constant 0 : index
    %c0_0 = arith.constant 0 : index
    %c0_1 = arith.constant 0 : index
    %0 = vector.load %arg1[%c0, %c0_0, %c0_1] : memref<1x4x256xf32, #tpu.memory_space<vmem>>, vector<1x4x256xf32>
    %1 = vector.shape_cast %0 : vector<1x4x256xf32> to vector<4x256xf32>
    %2 = tpu.iota {dimensions = array<i32: 1>} : vector<1x256xi32>
    %c16_i32 = arith.constant 16 : i32
    %c0_i32 = arith.constant 0 : i32
    %3 = arith.cmpi eq, %c16_i32, %c0_i32 : i32
    %c1_i32 = arith.constant 1 : i32
    %4 = arith.select %3, %c1_i32, %c16_i32 : i32
    %5 = vector.broadcast %4 : i32 to vector<1x256xi32>
    %6 = arith.remsi %2, %5 : vector<1x256xi32>
    %c0_i32_2 = arith.constant 0 : i32
    %7 = vector.broadcast %c0_i32_2 : i32 to vector<1x256xi32>
    %8 = arith.cmpi ne, %6, %7 : vector<1x256xi32>
    %c0_i32_3 = arith.constant 0 : i32
    %9 = vector.broadcast %c0_i32_3 : i32 to vector<1x256xi32>
    %10 = arith.cmpi slt, %6, %9 : vector<1x256xi32>
    %c0_i32_4 = arith.constant 0 : i32
    %11 = arith.cmpi slt, %4, %c0_i32_4 : i32
    %12 = vector.broadcast %11 : i1 to vector<1x256xi1>
    %13 = vector.broadcast %12 : vector<1x256xi1> to vector<1x256xi1>
    %14 = arith.xori %10, %13 : vector<1x256xi1>
    %15 = arith.andi %14, %8 : vector<1x256xi1>
    %16 = vector.broadcast %4 : i32 to vector<1x256xi32>
    %17 = arith.addi %6, %16 : vector<1x256xi32>
    %18 = arith.select %15, %17, %6 : vector<1x256xi1>, vector<1x256xi32>
    %cst = arith.constant 0.000000e+00 : f32
    %19 = vector.broadcast %cst : f32 to vector<4x17xf32>
    %c0_5 = arith.constant 0 : index
    %c0_6 = arith.constant 0 : index
    %20 = vector.load %arg11[%c0_5, %c0_6] : memref<4x290xf32, #tpu.memory_space<vmem>>, vector<4x17xf32>
    tpu.vector_store %arg11[%c0_5, %c0_6], %19 {strides = array<i32>} : memref<4x290xf32, #tpu.memory_space<vmem>>, vector<4x17xf32>,
    %cst_7 = arith.constant 0.000000e+00 : f32
    %21 = vector.broadcast %cst_7 : f32 to vector<4x17xf32>
    %c0_8 = arith.constant 0 : index
    %c273 = arith.constant 273 : index
    %22 = vector.load %arg11[%c0_8, %c273] : memref<4x290xf32, #tpu.memory_space<vmem>>, vector<4x17xf32>
    tpu.vector_store %arg11[%c0_8, %c273], %21 {strides = array<i32>} : memref<4x290xf32, #tpu.memory_space<vmem>>, vector<4x17xf32>,
    %c0_9 = arith.constant 0 : index
    %c17 = arith.constant 17 : index
    %23 = vector.load %arg11[%c0_9, %c17] : memref<4x290xf32, #tpu.memory_space<vmem>>, vector<4x256xf32>
    tpu.vector_store %arg11[%c0_9, %c17], %1 {strides = array<i32>} : memref<4x290xf32, #tpu.memory_space<vmem>>, vector<4x256xf32>,
    %cst_10 = arith.constant 0.000000e+00 : f32
    %24 = vector.broadcast %cst_10 : f32 to vector<4x256xf32>
    %c0_11 = arith.constant 0 : index
    %c0_12 = arith.constant 0 : index
    %25 = vector.load %arg11[%c0_11, %c0_12] : memref<4x290xf32, #tpu.memory_space<vmem>>, vector<4x256xf32>
    %c1_i32_13 = arith.constant 1 : i32
    %26 = vector.broadcast %c1_i32_13 : i32 to vector<1x256xi32>
    %27 = arith.cmpi sge, %18, %26 : vector<1x256xi32>
    %cst_14 = arith.constant 0.000000e+00 : f32
    %28 = vector.shape_cast %27 : vector<1x256xi1> to vector<1x256xi1>
    %29 = vector.broadcast %28 : vector<1x256xi1> to vector<4x256xi1>
    %30 = vector.broadcast %cst_14 : f32 to vector<4x256xf32>
    %31 = arith.select %29, %25, %30 : vector<4x256xi1>, vector<4x256xf32>
    %c0_15 = arith.constant 0 : index
    %c0_16 = arith.constant 0 : index
    %c0_17 = arith.constant 0 : index
    %32 = vector.load %arg2[%c0_15, %c0_16, %c0_17] : memref<9x4x4xf32, #tpu.memory_space<vmem>>, vector<1x4x4xf32>
    %33 = vector.shape_cast %32 : vector<1x4x4xf32> to vector<4x4xf32>
    %cst_18 = arith.constant dense<0.000000e+00> : vector<4x256xf32>
    %34 = tpu.matmul %33, %31, %cst_18 {dimension_numbers = #tpu.dot_dimension_numbers<[1], [0], [0], [1], [0, 0, 1, 1], [], []>} : vector<4x4xf32>, vector<4x256xf32>, vector<4x256xf32> -> vector<4x256xf32>
    %35 = arith.addf %24, %34 : vector<4x256xf32>
    %c0_19 = arith.constant 0 : index
    %c1 = arith.constant 1 : index
    %36 = vector.load %arg11[%c0_19, %c1] : memref<4x290xf32, #tpu.memory_space<vmem>>, vector<4x256xf32>
    %c1_20 = arith.constant 1 : index
    %c0_21 = arith.constant 0 : index
    %c0_22 = arith.constant 0 : index
    %37 = vector.load %arg2[%c1_20, %c0_21, %c0_22] : memref<9x4x4xf32, #tpu.memory_space<vmem>>, vector<1x4x4xf32>
    %38 = vector.shape_cast %37 : vector<1x4x4xf32> to vector<4x4xf32>
    %cst_23 = arith.constant dense<0.000000e+00> : vector<4x256xf32>
    %39 = tpu.matmul %38, %36, %cst_23 {dimension_numbers = #tpu.dot_dimension_numbers<[1], [0], [0], [1], [0, 0, 1, 1], [], []>} : vector<4x4xf32>, vector<4x256xf32>, vector<4x256xf32> -> vector<4x256xf32>
    %40 = arith.addf %35, %39 : vector<4x256xf32>
    %c0_24 = arith.constant 0 : index
    %c2 = arith.constant 2 : index
    %41 = vector.load %arg11[%c0_24, %c2] : memref<4x290xf32, #tpu.memory_space<vmem>>, vector<4x256xf32>
    %c14_i32 = arith.constant 14 : i32
    %42 = vector.broadcast %c14_i32 : i32 to vector<1x256xi32>
    %43 = arith.cmpi sle, %18, %42 : vector<1x256xi32>
    %cst_25 = arith.constant 0.000000e+00 : f32
    %44 = vector.shape_cast %43 : vector<1x256xi1> to vector<1x256xi1>
    %45 = vector.broadcast %44 : vector<1x256xi1> to vector<4x256xi1>
    %46 = vector.broadcast %cst_25 : f32 to vector<4x256xf32>
    %47 = arith.select %45, %41, %46 : vector<4x256xi1>, vector<4x256xf32>
    %c2_26 = arith.constant 2 : index
    %c0_27 = arith.constant 0 : index
    %c0_28 = arith.constant 0 : index
    %48 = vector.load %arg2[%c2_26, %c0_27, %c0_28] : memref<9x4x4xf32, #tpu.memory_space<vmem>>, vector<1x4x4xf32>
    %49 = vector.shape_cast %48 : vector<1x4x4xf32> to vector<4x4xf32>
    %cst_29 = arith.constant dense<0.000000e+00> : vector<4x256xf32>
    %50 = tpu.matmul %49, %47, %cst_29 {dimension_numbers = #tpu.dot_dimension_numbers<[1], [0], [0], [1], [0, 0, 1, 1], [], []>} : vector<4x4xf32>, vector<4x256xf32>, vector<4x256xf32> -> vector<4x256xf32>
    %51 = arith.addf %40, %50 : vector<4x256xf32>
    %c0_30 = arith.constant 0 : index
    %c16 = arith.constant 16 : index
    %52 = vector.load %arg11[%c0_30, %c16] : memref<4x290xf32, #tpu.memory_space<vmem>>, vector<4x256xf32>
    %c1_i32_31 = arith.constant 1 : i32
    %53 = vector.broadcast %c1_i32_31 : i32 to vector<1x256xi32>
    %54 = arith.cmpi sge, %18, %53 : vector<1x256xi32>
    %cst_32 = arith.constant 0.000000e+00 : f32
    %55 = vector.shape_cast %54 : vector<1x256xi1> to vector<1x256xi1>
    %56 = vector.broadcast %55 : vector<1x256xi1> to vector<4x256xi1>
    %57 = vector.broadcast %cst_32 : f32 to vector<4x256xf32>
    %58 = arith.select %56, %52, %57 : vector<4x256xi1>, vector<4x256xf32>
    %c3 = arith.constant 3 : index
    %c0_33 = arith.constant 0 : index
    %c0_34 = arith.constant 0 : index
    %59 = vector.load %arg2[%c3, %c0_33, %c0_34] : memref<9x4x4xf32, #tpu.memory_space<vmem>>, vector<1x4x4xf32>
    %60 = vector.shape_cast %59 : vector<1x4x4xf32> to vector<4x4xf32>
    %cst_35 = arith.constant dense<0.000000e+00> : vector<4x256xf32>
    %61 = tpu.matmul %60, %58, %cst_35 {dimension_numbers = #tpu.dot_dimension_numbers<[1], [0], [0], [1], [0, 0, 1, 1], [], []>} : vector<4x4xf32>, vector<4x256xf32>, vector<4x256xf32> -> vector<4x256xf32>
    %62 = arith.addf %51, %61 : vector<4x256xf32>
    %c0_36 = arith.constant 0 : index
    %c17_37 = arith.constant 17 : index
    %63 = vector.load %arg11[%c0_36, %c17_37] : memref<4x290xf32, #tpu.memory_space<vmem>>, vector<4x256xf32>
    %c4 = arith.constant 4 : index
    %c0_38 = arith.constant 0 : index
    %c0_39 = arith.constant 0 : index
    %64 = vector.load %arg2[%c4, %c0_38, %c0_39] : memref<9x4x4xf32, #tpu.memory_space<vmem>>, vector<1x4x4xf32>
    %65 = vector.shape_cast %64 : vector<1x4x4xf32> to vector<4x4xf32>
    %cst_40 = arith.constant dense<0.000000e+00> : vector<4x256xf32>
    %66 = tpu.matmul %65, %63, %cst_40 {dimension_numbers = #tpu.dot_dimension_numbers<[1], [0], [0], [1], [0, 0, 1, 1], [], []>} : vector<4x4xf32>, vector<4x256xf32>, vector<4x256xf32> -> vector<4x256xf32>
    %67 = arith.addf %62, %66 : vector<4x256xf32>
    %c0_41 = arith.constant 0 : index
    %c18 = arith.constant 18 : index
    %68 = vector.load %arg11[%c0_41, %c18] : memref<4x290xf32, #tpu.memory_space<vmem>>, vector<4x256xf32>
    %c14_i32_42 = arith.constant 14 : i32
    %69 = vector.broadcast %c14_i32_42 : i32 to vector<1x256xi32>
    %70 = arith.cmpi sle, %18, %69 : vector<1x256xi32>
    %cst_43 = arith.constant 0.000000e+00 : f32
    %71 = vector.shape_cast %70 : vector<1x256xi1> to vector<1x256xi1>
    %72 = vector.broadcast %71 : vector<1x256xi1> to vector<4x256xi1>
    %73 = vector.broadcast %cst_43 : f32 to vector<4x256xf32>
    %74 = arith.select %72, %68, %73 : vector<4x256xi1>, vector<4x256xf32>
    %c5 = arith.constant 5 : index
    %c0_44 = arith.constant 0 : index
    %c0_45 = arith.constant 0 : index
    %75 = vector.load %arg2[%c5, %c0_44, %c0_45] : memref<9x4x4xf32, #tpu.memory_space<vmem>>, vector<1x4x4xf32>
    %76 = vector.shape_cast %75 : vector<1x4x4xf32> to vector<4x4xf32>
    %cst_46 = arith.constant dense<0.000000e+00> : vector<4x256xf32>
    %77 = tpu.matmul %76, %74, %cst_46 {dimension_numbers = #tpu.dot_dimension_numbers<[1], [0], [0], [1], [0, 0, 1, 1], [], []>} : vector<4x4xf32>, vector<4x256xf32>, vector<4x256xf32> -> vector<4x256xf32>
    %78 = arith.addf %67, %77 : vector<4x256xf32>
    %c0_47 = arith.constant 0 : index
    %c32 = arith.constant 32 : index
    %79 = vector.load %arg11[%c0_47, %c32] : memref<4x290xf32, #tpu.memory_space<vmem>>, vector<4x256xf32>
    %c1_i32_48 = arith.constant 1 : i32
    %80 = vector.broadcast %c1_i32_48 : i32 to vector<1x256xi32>
    %81 = arith.cmpi sge, %18, %80 : vector<1x256xi32>
    %cst_49 = arith.constant 0.000000e+00 : f32
    %82 = vector.shape_cast %81 : vector<1x256xi1> to vector<1x256xi1>
    %83 = vector.broadcast %82 : vector<1x256xi1> to vector<4x256xi1>
    %84 = vector.broadcast %cst_49 : f32 to vector<4x256xf32>
    %85 = arith.select %83, %79, %84 : vector<4x256xi1>, vector<4x256xf32>
    %c6 = arith.constant 6 : index
    %c0_50 = arith.constant 0 : index
    %c0_51 = arith.constant 0 : index
    %86 = vector.load %arg2[%c6, %c0_50, %c0_51] : memref<9x4x4xf32, #tpu.memory_space<vmem>>, vector<1x4x4xf32>
    %87 = vector.shape_cast %86 : vector<1x4x4xf32> to vector<4x4xf32>
    %cst_52 = arith.constant dense<0.000000e+00> : vector<4x256xf32>
    %88 = tpu.matmul %87, %85, %cst_52 {dimension_numbers = #tpu.dot_dimension_numbers<[1], [0], [0], [1], [0, 0, 1, 1], [], []>} : vector<4x4xf32>, vector<4x256xf32>, vector<4x256xf32> -> vector<4x256xf32>
    %89 = arith.addf %78, %88 : vector<4x256xf32>
    %c0_53 = arith.constant 0 : index
    %c33 = arith.constant 33 : index
    %90 = vector.load %arg11[%c0_53, %c33] : memref<4x290xf32, #tpu.memory_space<vmem>>, vector<4x256xf32>
    %c7 = arith.constant 7 : index
    %c0_54 = arith.constant 0 : index
    %c0_55 = arith.constant 0 : index
    %91 = vector.load %arg2[%c7, %c0_54, %c0_55] : memref<9x4x4xf32, #tpu.memory_space<vmem>>, vector<1x4x4xf32>
    %92 = vector.shape_cast %91 : vector<1x4x4xf32> to vector<4x4xf32>
    %cst_56 = arith.constant dense<0.000000e+00> : vector<4x256xf32>
    %93 = tpu.matmul %92, %90, %cst_56 {dimension_numbers = #tpu.dot_dimension_numbers<[1], [0], [0], [1], [0, 0, 1, 1], [], []>} : vector<4x4xf32>, vector<4x256xf32>, vector<4x256xf32> -> vector<4x256xf32>
    %94 = arith.addf %89, %93 : vector<4x256xf32>
    %c0_57 = arith.constant 0 : index
    %c34 = arith.constant 34 : index
    %95 = vector.load %arg11[%c0_57, %c34] : memref<4x290xf32, #tpu.memory_space<vmem>>, vector<4x256xf32>
    %c14_i32_58 = arith.constant 14 : i32
    %96 = vector.broadcast %c14_i32_58 : i32 to vector<1x256xi32>
    %97 = arith.cmpi sle, %18, %96 : vector<1x256xi32>
    %cst_59 = arith.constant 0.000000e+00 : f32
    %98 = vector.shape_cast %97 : vector<1x256xi1> to vector<1x256xi1>
    %99 = vector.broadcast %98 : vector<1x256xi1> to vector<4x256xi1>
    %100 = vector.broadcast %cst_59 : f32 to vector<4x256xf32>
    %101 = arith.select %99, %95, %100 : vector<4x256xi1>, vector<4x256xf32>
    %c8 = arith.constant 8 : index
    %c0_60 = arith.constant 0 : index
    %c0_61 = arith.constant 0 : index
    %102 = vector.load %arg2[%c8, %c0_60, %c0_61] : memref<9x4x4xf32, #tpu.memory_space<vmem>>, vector<1x4x4xf32>
    %103 = vector.shape_cast %102 : vector<1x4x4xf32> to vector<4x4xf32>
    %cst_62 = arith.constant dense<0.000000e+00> : vector<4x256xf32>
    %104 = tpu.matmul %103, %101, %cst_62 {dimension_numbers = #tpu.dot_dimension_numbers<[1], [0], [0], [1], [0, 0, 1, 1], [], []>} : vector<4x4xf32>, vector<4x256xf32>, vector<4x256xf32> -> vector<4x256xf32>
    %105 = arith.addf %94, %104 : vector<4x256xf32>
    %c0_63 = arith.constant 0 : index
    %c0_64 = arith.constant 0 : index
    %106 = vector.load %arg3[%c0_63, %c0_64] : memref<4x1xf32, #tpu.memory_space<vmem>>, vector<4x1xf32>
    %107 = vector.broadcast %106 : vector<4x1xf32> to vector<4x256xf32>
    %108 = arith.mulf %105, %107 : vector<4x256xf32>
    %c0_65 = arith.constant 0 : index
    %c0_66 = arith.constant 0 : index
    %109 = vector.load %arg4[%c0_65, %c0_66] : memref<4x1xf32, #tpu.memory_space<vmem>>, vector<4x1xf32>
    %110 = vector.broadcast %109 : vector<4x1xf32> to vector<4x256xf32>
    %111 = arith.addf %108, %110 : vector<4x256xf32>
    %cst_67 = arith.constant 0.000000e+00 : f32
    %112 = vector.broadcast %cst_67 : f32 to vector<4x256xf32>
    %113 = arith.maximumf %111, %112 : vector<4x256xf32>
    %cst_68 = arith.constant 0.000000e+00 : f32
    %114 = vector.broadcast %cst_68 : f32 to vector<4x17xf32>
    %c0_69 = arith.constant 0 : index
    %c0_70 = arith.constant 0 : index
    %115 = vector.load %arg12[%c0_69, %c0_70] : memref<4x290xf32, #tpu.memory_space<vmem>>, vector<4x17xf32>
    tpu.vector_store %arg12[%c0_69, %c0_70], %114 {strides = array<i32>} : memref<4x290xf32, #tpu.memory_space<vmem>>, vector<4x17xf32>,
    %cst_71 = arith.constant 0.000000e+00 : f32
    %116 = vector.broadcast %cst_71 : f32 to vector<4x17xf32>
    %c0_72 = arith.constant 0 : index
    %c273_73 = arith.constant 273 : index
    %117 = vector.load %arg12[%c0_72, %c273_73] : memref<4x290xf32, #tpu.memory_space<vmem>>, vector<4x17xf32>
    tpu.vector_store %arg12[%c0_72, %c273_73], %116 {strides = array<i32>} : memref<4x290xf32, #tpu.memory_space<vmem>>, vector<4x17xf32>,
    %c0_74 = arith.constant 0 : index
    %c17_75 = arith.constant 17 : index
    %118 = vector.load %arg12[%c0_74, %c17_75] : memref<4x290xf32, #tpu.memory_space<vmem>>, vector<4x256xf32>
    tpu.vector_store %arg12[%c0_74, %c17_75], %113 {strides = array<i32>} : memref<4x290xf32, #tpu.memory_space<vmem>>, vector<4x256xf32>,
    %cst_76 = arith.constant 0.000000e+00 : f32
    %119 = vector.broadcast %cst_76 : f32 to vector<4x256xf32>
    %c0_77 = arith.constant 0 : index
    %c0_78 = arith.constant 0 : index
    %120 = vector.load %arg12[%c0_77, %c0_78] : memref<4x290xf32, #tpu.memory_space<vmem>>, vector<4x256xf32>
    %c1_i32_79 = arith.constant 1 : i32
    %121 = vector.broadcast %c1_i32_79 : i32 to vector<1x256xi32>
    %122 = arith.cmpi sge, %18, %121 : vector<1x256xi32>
    %cst_80 = arith.constant 0.000000e+00 : f32
    %123 = vector.shape_cast %122 : vector<1x256xi1> to vector<1x256xi1>
    %124 = vector.broadcast %123 : vector<1x256xi1> to vector<4x256xi1>
    %125 = vector.broadcast %cst_80 : f32 to vector<4x256xf32>
    %126 = arith.select %124, %120, %125 : vector<4x256xi1>, vector<4x256xf32>
    %c0_81 = arith.constant 0 : index
    %c0_82 = arith.constant 0 : index
    %c0_83 = arith.constant 0 : index
    %127 = vector.load %arg5[%c0_81, %c0_82, %c0_83] : memref<9x4x4xf32, #tpu.memory_space<vmem>>, vector<1x4x4xf32>
    %128 = vector.shape_cast %127 : vector<1x4x4xf32> to vector<4x4xf32>
    %cst_84 = arith.constant dense<0.000000e+00> : vector<4x256xf32>
    %129 = tpu.matmul %128, %126, %cst_84 {dimension_numbers = #tpu.dot_dimension_numbers<[1], [0], [0], [1], [0, 0, 1, 1], [], []>} : vector<4x4xf32>, vector<4x256xf32>, vector<4x256xf32> -> vector<4x256xf32>
    %130 = arith.addf %119, %129 : vector<4x256xf32>
    %c0_85 = arith.constant 0 : index
    %c1_86 = arith.constant 1 : index
    %131 = vector.load %arg12[%c0_85, %c1_86] : memref<4x290xf32, #tpu.memory_space<vmem>>, vector<4x256xf32>
    %c1_87 = arith.constant 1 : index
    %c0_88 = arith.constant 0 : index
    %c0_89 = arith.constant 0 : index
    %132 = vector.load %arg5[%c1_87, %c0_88, %c0_89] : memref<9x4x4xf32, #tpu.memory_space<vmem>>, vector<1x4x4xf32>
    %133 = vector.shape_cast %132 : vector<1x4x4xf32> to vector<4x4xf32>
    %cst_90 = arith.constant dense<0.000000e+00> : vector<4x256xf32>
    %134 = tpu.matmul %133, %131, %cst_90 {dimension_numbers = #tpu.dot_dimension_numbers<[1], [0], [0], [1], [0, 0, 1, 1], [], []>} : vector<4x4xf32>, vector<4x256xf32>, vector<4x256xf32> -> vector<4x256xf32>
    %135 = arith.addf %130, %134 : vector<4x256xf32>
    %c0_91 = arith.constant 0 : index
    %c2_92 = arith.constant 2 : index
    %136 = vector.load %arg12[%c0_91, %c2_92] : memref<4x290xf32, #tpu.memory_space<vmem>>, vector<4x256xf32>
    %c14_i32_93 = arith.constant 14 : i32
    %137 = vector.broadcast %c14_i32_93 : i32 to vector<1x256xi32>
    %138 = arith.cmpi sle, %18, %137 : vector<1x256xi32>
    %cst_94 = arith.constant 0.000000e+00 : f32
    %139 = vector.shape_cast %138 : vector<1x256xi1> to vector<1x256xi1>
    %140 = vector.broadcast %139 : vector<1x256xi1> to vector<4x256xi1>
    %141 = vector.broadcast %cst_94 : f32 to vector<4x256xf32>
    %142 = arith.select %140, %136, %141 : vector<4x256xi1>, vector<4x256xf32>
    %c2_95 = arith.constant 2 : index
    %c0_96 = arith.constant 0 : index
    %c0_97 = arith.constant 0 : index
    %143 = vector.load %arg5[%c2_95, %c0_96, %c0_97] : memref<9x4x4xf32, #tpu.memory_space<vmem>>, vector<1x4x4xf32>
    %144 = vector.shape_cast %143 : vector<1x4x4xf32> to vector<4x4xf32>
    %cst_98 = arith.constant dense<0.000000e+00> : vector<4x256xf32>
    %145 = tpu.matmul %144, %142, %cst_98 {dimension_numbers = #tpu.dot_dimension_numbers<[1], [0], [0], [1], [0, 0, 1, 1], [], []>} : vector<4x4xf32>, vector<4x256xf32>, vector<4x256xf32> -> vector<4x256xf32>
    %146 = arith.addf %135, %145 : vector<4x256xf32>
    %c0_99 = arith.constant 0 : index
    %c16_100 = arith.constant 16 : index
    %147 = vector.load %arg12[%c0_99, %c16_100] : memref<4x290xf32, #tpu.memory_space<vmem>>, vector<4x256xf32>
    %c1_i32_101 = arith.constant 1 : i32
    %148 = vector.broadcast %c1_i32_101 : i32 to vector<1x256xi32>
    %149 = arith.cmpi sge, %18, %148 : vector<1x256xi32>
    %cst_102 = arith.constant 0.000000e+00 : f32
    %150 = vector.shape_cast %149 : vector<1x256xi1> to vector<1x256xi1>
    %151 = vector.broadcast %150 : vector<1x256xi1> to vector<4x256xi1>
    %152 = vector.broadcast %cst_102 : f32 to vector<4x256xf32>
    %153 = arith.select %151, %147, %152 : vector<4x256xi1>, vector<4x256xf32>
    %c3_103 = arith.constant 3 : index
    %c0_104 = arith.constant 0 : index
    %c0_105 = arith.constant 0 : index
    %154 = vector.load %arg5[%c3_103, %c0_104, %c0_105] : memref<9x4x4xf32, #tpu.memory_space<vmem>>, vector<1x4x4xf32>
    %155 = vector.shape_cast %154 : vector<1x4x4xf32> to vector<4x4xf32>
    %cst_106 = arith.constant dense<0.000000e+00> : vector<4x256xf32>
    %156 = tpu.matmul %155, %153, %cst_106 {dimension_numbers = #tpu.dot_dimension_numbers<[1], [0], [0], [1], [0, 0, 1, 1], [], []>} : vector<4x4xf32>, vector<4x256xf32>, vector<4x256xf32> -> vector<4x256xf32>
    %157 = arith.addf %146, %156 : vector<4x256xf32>
    %c0_107 = arith.constant 0 : index
    %c17_108 = arith.constant 17 : index
    %158 = vector.load %arg12[%c0_107, %c17_108] : memref<4x290xf32, #tpu.memory_space<vmem>>, vector<4x256xf32>
    %c4_109 = arith.constant 4 : index
    %c0_110 = arith.constant 0 : index
    %c0_111 = arith.constant 0 : index
    %159 = vector.load %arg5[%c4_109, %c0_110, %c0_111] : memref<9x4x4xf32, #tpu.memory_space<vmem>>, vector<1x4x4xf32>
    %160 = vector.shape_cast %159 : vector<1x4x4xf32> to vector<4x4xf32>
    %cst_112 = arith.constant dense<0.000000e+00> : vector<4x256xf32>
    %161 = tpu.matmul %160, %158, %cst_112 {dimension_numbers = #tpu.dot_dimension_numbers<[1], [0], [0], [1], [0, 0, 1, 1], [], []>} : vector<4x4xf32>, vector<4x256xf32>, vector<4x256xf32> -> vector<4x256xf32>
    %162 = arith.addf %157, %161 : vector<4x256xf32>
    %c0_113 = arith.constant 0 : index
    %c18_114 = arith.constant 18 : index
    %163 = vector.load %arg12[%c0_113, %c18_114] : memref<4x290xf32, #tpu.memory_space<vmem>>, vector<4x256xf32>
    %c14_i32_115 = arith.constant 14 : i32
    %164 = vector.broadcast %c14_i32_115 : i32 to vector<1x256xi32>
    %165 = arith.cmpi sle, %18, %164 : vector<1x256xi32>
    %cst_116 = arith.constant 0.000000e+00 : f32
    %166 = vector.shape_cast %165 : vector<1x256xi1> to vector<1x256xi1>
    %167 = vector.broadcast %166 : vector<1x256xi1> to vector<4x256xi1>
    %168 = vector.broadcast %cst_116 : f32 to vector<4x256xf32>
    %169 = arith.select %167, %163, %168 : vector<4x256xi1>, vector<4x256xf32>
    %c5_117 = arith.constant 5 : index
    %c0_118 = arith.constant 0 : index
    %c0_119 = arith.constant 0 : index
    %170 = vector.load %arg5[%c5_117, %c0_118, %c0_119] : memref<9x4x4xf32, #tpu.memory_space<vmem>>, vector<1x4x4xf32>
    %171 = vector.shape_cast %170 : vector<1x4x4xf32> to vector<4x4xf32>
    %cst_120 = arith.constant dense<0.000000e+00> : vector<4x256xf32>
    %172 = tpu.matmul %171, %169, %cst_120 {dimension_numbers = #tpu.dot_dimension_numbers<[1], [0], [0], [1], [0, 0, 1, 1], [], []>} : vector<4x4xf32>, vector<4x256xf32>, vector<4x256xf32> -> vector<4x256xf32>
    %173 = arith.addf %162, %172 : vector<4x256xf32>
    %c0_121 = arith.constant 0 : index
    %c32_122 = arith.constant 32 : index
    %174 = vector.load %arg12[%c0_121, %c32_122] : memref<4x290xf32, #tpu.memory_space<vmem>>, vector<4x256xf32>
    %c1_i32_123 = arith.constant 1 : i32
    %175 = vector.broadcast %c1_i32_123 : i32 to vector<1x256xi32>
    %176 = arith.cmpi sge, %18, %175 : vector<1x256xi32>
    %cst_124 = arith.constant 0.000000e+00 : f32
    %177 = vector.shape_cast %176 : vector<1x256xi1> to vector<1x256xi1>
    %178 = vector.broadcast %177 : vector<1x256xi1> to vector<4x256xi1>
    %179 = vector.broadcast %cst_124 : f32 to vector<4x256xf32>
    %180 = arith.select %178, %174, %179 : vector<4x256xi1>, vector<4x256xf32>
    %c6_125 = arith.constant 6 : index
    %c0_126 = arith.constant 0 : index
    %c0_127 = arith.constant 0 : index
    %181 = vector.load %arg5[%c6_125, %c0_126, %c0_127] : memref<9x4x4xf32, #tpu.memory_space<vmem>>, vector<1x4x4xf32>
    %182 = vector.shape_cast %181 : vector<1x4x4xf32> to vector<4x4xf32>
    %cst_128 = arith.constant dense<0.000000e+00> : vector<4x256xf32>
    %183 = tpu.matmul %182, %180, %cst_128 {dimension_numbers = #tpu.dot_dimension_numbers<[1], [0], [0], [1], [0, 0, 1, 1], [], []>} : vector<4x4xf32>, vector<4x256xf32>, vector<4x256xf32> -> vector<4x256xf32>
    %184 = arith.addf %173, %183 : vector<4x256xf32>
    %c0_129 = arith.constant 0 : index
    %c33_130 = arith.constant 33 : index
    %185 = vector.load %arg12[%c0_129, %c33_130] : memref<4x290xf32, #tpu.memory_space<vmem>>, vector<4x256xf32>
    %c7_131 = arith.constant 7 : index
    %c0_132 = arith.constant 0 : index
    %c0_133 = arith.constant 0 : index
    %186 = vector.load %arg5[%c7_131, %c0_132, %c0_133] : memref<9x4x4xf32, #tpu.memory_space<vmem>>, vector<1x4x4xf32>
    %187 = vector.shape_cast %186 : vector<1x4x4xf32> to vector<4x4xf32>
    %cst_134 = arith.constant dense<0.000000e+00> : vector<4x256xf32>
    %188 = tpu.matmul %187, %185, %cst_134 {dimension_numbers = #tpu.dot_dimension_numbers<[1], [0], [0], [1], [0, 0, 1, 1], [], []>} : vector<4x4xf32>, vector<4x256xf32>, vector<4x256xf32> -> vector<4x256xf32>
    %189 = arith.addf %184, %188 : vector<4x256xf32>
    %c0_135 = arith.constant 0 : index
    %c34_136 = arith.constant 34 : index
    %190 = vector.load %arg12[%c0_135, %c34_136] : memref<4x290xf32, #tpu.memory_space<vmem>>, vector<4x256xf32>
    %c14_i32_137 = arith.constant 14 : i32
    %191 = vector.broadcast %c14_i32_137 : i32 to vector<1x256xi32>
    %192 = arith.cmpi sle, %18, %191 : vector<1x256xi32>
    %cst_138 = arith.constant 0.000000e+00 : f32
    %193 = vector.shape_cast %192 : vector<1x256xi1> to vector<1x256xi1>
    %194 = vector.broadcast %193 : vector<1x256xi1> to vector<4x256xi1>
    %195 = vector.broadcast %cst_138 : f32 to vector<4x256xf32>
    %196 = arith.select %194, %190, %195 : vector<4x256xi1>, vector<4x256xf32>
    %c8_139 = arith.constant 8 : index
    %c0_140 = arith.constant 0 : index
    %c0_141 = arith.constant 0 : index
    %197 = vector.load %arg5[%c8_139, %c0_140, %c0_141] : memref<9x4x4xf32, #tpu.memory_space<vmem>>, vector<1x4x4xf32>
    %198 = vector.shape_cast %197 : vector<1x4x4xf32> to vector<4x4xf32>
    %cst_142 = arith.constant dense<0.000000e+00> : vector<4x256xf32>
    %199 = tpu.matmul %198, %196, %cst_142 {dimension_numbers = #tpu.dot_dimension_numbers<[1], [0], [0], [1], [0, 0, 1, 1], [], []>} : vector<4x4xf32>, vector<4x256xf32>, vector<4x256xf32> -> vector<4x256xf32>
    %200 = arith.addf %189, %199 : vector<4x256xf32>
    %c0_143 = arith.constant 0 : index
    %c0_144 = arith.constant 0 : index
    %201 = vector.load %arg6[%c0_143, %c0_144] : memref<4x1xf32, #tpu.memory_space<vmem>>, vector<4x1xf32>
    %202 = vector.broadcast %201 : vector<4x1xf32> to vector<4x256xf32>
    %203 = arith.mulf %200, %202 : vector<4x256xf32>
    %c0_145 = arith.constant 0 : index
    %c0_146 = arith.constant 0 : index
    %204 = vector.load %arg7[%c0_145, %c0_146] : memref<4x1xf32, #tpu.memory_space<vmem>>, vector<4x1xf32>
    %205 = vector.broadcast %204 : vector<4x1xf32> to vector<4x256xf32>
    %206 = arith.addf %203, %205 : vector<4x256xf32>
    %cst_147 = arith.constant dense<0.000000e+00> : vector<4xf32>
    %207 = vector.multi_reduction <add>, %1, %cst_147 [1] : vector<4x256xf32> to vector<4xf32>
    %208 = vector.shape_cast %207 : vector<4xf32> to vector<4x1xf32>
    %cst_148 = arith.constant 3.906250e-03 : f32
    %209 = vector.broadcast %cst_148 : f32 to vector<4x1xf32>
    %210 = arith.mulf %208, %209 : vector<4x1xf32>
    %cst_149 = arith.constant dense<0.000000e+00> : vector<4xf32>
    %211 = vector.multi_reduction <add>, %206, %cst_149 [1] : vector<4x256xf32> to vector<4xf32>
    %212 = vector.shape_cast %211 : vector<4xf32> to vector<4x1xf32>
    %cst_150 = arith.constant 3.906250e-03 : f32
    %213 = vector.broadcast %cst_150 : f32 to vector<4x1xf32>
    %214 = arith.mulf %212, %213 : vector<4x1xf32>
    %215 = arith.addf %210, %214 : vector<4x1xf32>
    %cst_151 = arith.constant 0.000000e+00 : f32
    %216 = vector.broadcast %cst_151 : f32 to vector<4x1xf32>
    %217 = arith.maximumf %215, %216 : vector<4x1xf32>
    %c0_152 = arith.constant 0 : index
    %c0_153 = arith.constant 0 : index
    %218 = vector.load %arg8[%c0_152, %c0_153] : memref<4x4xf32, #tpu.memory_space<vmem>>, vector<4x4xf32>
    %cst_154 = arith.constant dense<0.000000e+00> : vector<4x1xf32>
    %219 = tpu.matmul %218, %217, %cst_154 {dimension_numbers = #tpu.dot_dimension_numbers<[1], [0], [0], [1], [0, 0, 1, 1], [], []>} : vector<4x4xf32>, vector<4x1xf32>, vector<4x1xf32> -> vector<4x1xf32>
    %cst_155 = arith.constant 0.000000e+00 : f32
    %220 = vector.broadcast %cst_155 : f32 to vector<4x1xf32>
    %221 = arith.subf %220, %219 : vector<4x1xf32>
    %222 = math.exp %221 : vector<4x1xf32>
    %cst_156 = arith.constant 1.000000e+00 : f32
    %223 = vector.broadcast %cst_156 : f32 to vector<4x1xf32>
    %224 = arith.addf %223, %222 : vector<4x1xf32>
    %cst_157 = arith.constant 1.000000e+00 : f32
    %225 = vector.broadcast %cst_157 : f32 to vector<4x1xf32>
    %226 = arith.divf %225, %224 : vector<4x1xf32>
    %227 = vector.broadcast %226 : vector<4x1xf32> to vector<4x256xf32>
    %228 = arith.mulf %1, %227 : vector<4x256xf32>
    %229 = arith.addf %206, %228 : vector<4x256xf32>
    %cst_158 = arith.constant 0.000000e+00 : f32
    %230 = vector.broadcast %cst_158 : f32 to vector<4x256xf32>
    %231 = arith.maximumf %229, %230 : vector<4x256xf32>
    %c0_159 = arith.constant 0 : index
    %c0_160 = arith.constant 0 : index
    %c0_161 = arith.constant 0 : index
    %232 = vector.load %arg9[%c0_159, %c0_160, %c0_161] : memref<1x4x256xf32, #tpu.memory_space<vmem>>, vector<1x4x256xf32>
    %233 = vector.shape_cast %232 : vector<1x4x256xf32> to vector<4x256xf32>
    %234 = vector.shape_cast %231 : vector<4x256xf32> to vector<1x4x256xf32>
    tpu.vector_store %arg9[%c0_159, %c0_160, %c0_161], %234 {strides = array<i32>} : memref<1x4x256xf32, #tpu.memory_space<vmem>>, vector<1x4x256xf32>,
    %c0_162 = arith.constant 0 : index
    %c0_163 = arith.constant 0 : index
    %c0_164 = arith.constant 0 : index
    %235 = vector.load %arg10[%c0_162, %c0_163, %c0_164] : memref<1x4x1xf32, #tpu.memory_space<vmem>>, vector<1x4x1xf32>
    %236 = vector.shape_cast %235 : vector<1x4x1xf32> to vector<4x1xf32>
    %237 = vector.shape_cast %219 : vector<4x1xf32> to vector<1x4x1xf32>
    tpu.vector_store %arg10[%c0_162, %c0_163, %c0_164], %237 {strides = array<i32>} : memref<1x4x1xf32, #tpu.memory_space<vmem>>, vector<1x4x1xf32>,
    return
  }
  func.func @transform_0(%arg0: i32) -> (i32, i32, i32) {
    %c0_i32 = arith.constant 0 : i32
    %c0_i32_0 = arith.constant 0 : i32
    %c0_i32_1 = arith.constant 0 : i32
    return %arg0, %c0_i32, %c0_i32_0 : i32, i32, i32
  }
  func.func @transform_1(%arg0: i32) -> (i32, i32, i32) {
    %c0_i32 = arith.constant 0 : i32
    %c0_i32_0 = arith.constant 0 : i32
    %c0_i32_1 = arith.constant 0 : i32
    %c0_i32_2 = arith.constant 0 : i32
    return %c0_i32, %c0_i32_0, %c0_i32_1 : i32, i32, i32
  }
  func.func @transform_2(%arg0: i32) -> (i32, i32) {
    %c0_i32 = arith.constant 0 : i32
    %c0_i32_0 = arith.constant 0 : i32
    %c0_i32_1 = arith.constant 0 : i32
    return %c0_i32, %c0_i32_0 : i32, i32
  }
  func.func @transform_3(%arg0: i32) -> (i32, i32) {
    %c0_i32 = arith.constant 0 : i32
    %c0_i32_0 = arith.constant 0 : i32
    %c0_i32_1 = arith.constant 0 : i32
    return %c0_i32, %c0_i32_0 : i32, i32
  }
  func.func @transform_4(%arg0: i32) -> (i32, i32, i32) {
    %c0_i32 = arith.constant 0 : i32
    %c0_i32_0 = arith.constant 0 : i32
    %c0_i32_1 = arith.constant 0 : i32
    %c0_i32_2 = arith.constant 0 : i32
    return %c0_i32, %c0_i32_0, %c0_i32_1 : i32, i32, i32
  }
  func.func @transform_5(%arg0: i32) -> (i32, i32) {
    %c0_i32 = arith.constant 0 : i32
    %c0_i32_0 = arith.constant 0 : i32
    %c0_i32_1 = arith.constant 0 : i32
    return %c0_i32, %c0_i32_0 : i32, i32
  }
  func.func @transform_6(%arg0: i32) -> (i32, i32) {
    %c0_i32 = arith.constant 0 : i32
    %c0_i32_0 = arith.constant 0 : i32
    %c0_i32_1 = arith.constant 0 : i32
    return %c0_i32, %c0_i32_0 : i32, i32
  }
  func.func @transform_7(%arg0: i32) -> (i32, i32) {
    %c0_i32 = arith.constant 0 : i32
    %c0_i32_0 = arith.constant 0 : i32
    %c0_i32_1 = arith.constant 0 : i32
    return %c0_i32, %c0_i32_0 : i32, i32
  }
  func.func @transform_8(%arg0: i32) -> (i32, i32, i32) {
    %c0_i32 = arith.constant 0 : i32
    %c0_i32_0 = arith.constant 0 : i32
    %c0_i32_1 = arith.constant 0 : i32
    return %arg0, %c0_i32, %c0_i32_0 : i32, i32, i32
  }
  func.func @transform_9(%arg0: i32) -> (i32, i32, i32) {
    %c0_i32 = arith.constant 0 : i32
    %c0_i32_0 = arith.constant 0 : i32
    %c0_i32_1 = arith.constant 0 : i32
    return %arg0, %c0_i32, %c0_i32_0 : i32, i32, i32
  }
}

</mosaic_0001>

<llo_original>
// kernel: tpu_custom_call.1
$region0: #{tpu_custom_call.1}
  #allocation0 [shape = 'u32[]', space=smem, size = 0x4, offset = 0x4, fixed_abs, tag = 'smem constant byte address 0x4 - core index']
  #allocation1 [shape = 'u32[72,128]{1,0:T(1,128)}', space=vmem, size = 0x9000, scoped, tag = 'internal scratch']
  #allocation2 [shape = 'f32[4,290]{1,0:T(4,128)}', space=vmem, size = 0x1800, scoped, tag = 'scratch operand']
  #allocation3 [shape = 'f32[4,290]{1,0:T(4,128)}', space=vmem, size = 0x1800, scoped, tag = 'scratch operand']
  %s0 = inlined_call_operand.vmem [shape: f32[2,4,256], index: 0, kind: input, shape index: {}]
  %s1 = inlined_call_operand.vmem [shape: f32[9,4,4], index: 1, kind: input, shape index: {}]
  %s2 = inlined_call_operand.vmem [shape: f32[4,1], index: 2, kind: input, shape index: {}]
  %s3 = inlined_call_operand.vmem [shape: f32[4,1], index: 3, kind: input, shape index: {}]
  %s4 = inlined_call_operand.vmem [shape: f32[9,4,4], index: 4, kind: input, shape index: {}]
  %s5 = inlined_call_operand.vmem [shape: f32[4,1], index: 5, kind: input, shape index: {}]
  %s6 = inlined_call_operand.vmem [shape: f32[4,1], index: 6, kind: input, shape index: {}]
  %s7 = inlined_call_operand.vmem [shape: f32[4,4], index: 7, kind: input, shape index: {}]
  %s8 = inlined_call_operand.hbm [shape: f32[2,4,256], index: 8, kind: output, shape index: {0}]
  %s9 = inlined_call_operand.vmem [shape: f32[2,4,1], index: 9, kind: output, shape index: {1}]
  %10 = xla_tuple %s8, %s9
  %s11 = sld [smem:[#allocation0]]
  $region73: #{tpu_custom_call.1} parent=0
    _
  %s13 = ssub.s32 1, %s11
  %s14 = scalar_select 0, %s13, %s11
  $region1: #{tpu_custom_call.1} parent=0
    #allocation4 [shape = 'u8[8192]{0}', space=vmem, size = 0x2000, scoped, tag = 'output window, operand 0']
    #allocation5 [shape = 's32[2]{0}', space=sflag, size = 0x8, scoped, tag = 'scoped memory for tpu_custom_call.1']
    %15 = vsyncpa [#allocation5], 0
    %s16 = scalar_lea.sflag [#allocation5], 1
    %17 = vsyncpa %s16, 0
    loop: start=0, step=1, limit=4
    $region2: #{tpu_custom_call.1} parent=1 // loop_pre_header
      _
    $region3: #{tpu_custom_call.1} parent=1 // loop_header
      %s19 = sphi 0, %s23
      %p20 = scmp.ge.s32.totalorder %s19, 4
      %s29 = sphi 0, %s31
      %s32 = sphi 0, %s29
      %s33 = sphi 0, %s32
      %s49 = sphi 0, %s33
      %s53 = sphi 0, %s53
      %s55 = sphi 0, %s53
      %s56 = sphi 0, %s55
      %s70 = sphi 0, %s56
      %s74 = sphi 0, %s74
      %s76 = sphi 0, %s74
      %s77 = sphi 0, %s76
      %s91 = sphi 0, %s77
      %s95 = sphi 0, %s95
      %s97 = sphi 0, %s95
      %s98 = sphi 0, %s97
      %s112 = sphi 0, %s98
      %s116 = sphi 0, %s116
      %s118 = sphi 0, %s116
      %s119 = sphi 0, %s118
      %s133 = sphi 0, %s119
      %s137 = sphi 0, %s137
      %s139 = sphi 0, %s137
      %s140 = sphi 0, %s139
      %s154 = sphi 0, %s140
      %s158 = sphi 0, %s158
      %s160 = sphi 0, %s158
      %s161 = sphi 0, %s160
      %s175 = sphi 0, %s161
      %s179 = sphi 0, %s179
      %s181 = sphi 0, %s179
      %s182 = sphi 0, %s181
      %s196 = sphi 0, %s182
      %s202 = sphi 0, %s204
      %s205 = sphi 0, %s202
      %s206 = sphi 0, %s205
      %s222 = sphi 0, %s206
      %s228 = sphi 0, %s230
      %s231 = sphi 0, %s228
      %s232 = sphi 0, %s231
      %s248 = sphi 0, %s232
    $region4: #{tpu_custom_call.1} parent=1 // loop_header_branch
      %22 = sbr.rel (%p20) target = $region8
    $region5: #{tpu_custom_call.1} parent=1 // loop_body
      %s24 = ssub.s32 %s19, 1
      %s25 = ssub.s32 %s19, 2
      %s26 = sadd.s32 %s19, 1
      %s27 = ssub.s32 %s19, %s26
      %p28 = scmp.eq.s32.totalorder %s27, 0
      %s30 = sadd.s32 %s29, 1
      %s31 = scalar_select %p28, %s29, %s30
      %p34 = pneg %p28
      %p35 = scmp.eq.s32.totalorder %s19, 1
      %p36 = por %p34, %p35
      %p37 = scmp.ne.s32.totalorder %s29, %s32
      %p38 = scmp.eq.s32.totalorder %s19, 0
      %p39 = por %p37, %p38
      %p40 = scmp.ne.s32.totalorder %s29, %s32
      %p41 = scmp.eq.s32.totalorder %s24, 1
      %p42 = por %p40, %p41
      %p43 = scmp.ne.s32.totalorder %s32, %s33
      %p44 = scmp.eq.s32.totalorder %s24, 0
      %p45 = por %p43, %p44
      %p46 = scmp.ne.s32.totalorder %s32, %s33
      %p47 = scmp.eq.s32.totalorder %s25, 1
      %p48 = por %p46, %p47
      %p50 = scmp.ne.s32.totalorder %s33, %s49
      %p51 = scmp.eq.s32.totalorder %s25, 0
      %p52 = por %p50, %p51
      %s54 = sadd.s32 %s53, 1
      %p57 = scmp.eq.s32.totalorder %s19, 1
      %p58 = scmp.ne.s32.totalorder %s53, %s55
      %p59 = scmp.eq.s32.totalorder %s19, 0
      %p60 = por %p58, %p59
      %p61 = scmp.ne.s32.totalorder %s53, %s55
      %p62 = scmp.eq.s32.totalorder %s24, 1
      %p63 = por %p61, %p62
      %p64 = scmp.ne.s32.totalorder %s55, %s56
      %p65 = scmp.eq.s32.totalorder %s24, 0
      %p66 = por %p64, %p65
      %p67 = scmp.ne.s32.totalorder %s55, %s56
      %p68 = scmp.eq.s32.totalorder %s25, 1
      %p69 = por %p67, %p68
      %p71 = scmp.ne.s32.totalorder %s56, %s70
      %p72 = scmp.eq.s32.totalorder %s25, 0
      %p73 = por %p71, %p72
      %s75 = sadd.s32 %s74, 1
      %p78 = scmp.eq.s32.totalorder %s19, 1
      %p79 = scmp.ne.s32.totalorder %s74, %s76
      %p80 = scmp.eq.s32.totalorder %s19, 0
      %p81 = por %p79, %p80
      %p82 = scmp.ne.s32.totalorder %s74, %s76
      %p83 = scmp.eq.s32.totalorder %s24, 1
      %p84 = por %p82, %p83
      %p85 = scmp.ne.s32.totalorder %s76, %s77
      %p86 = scmp.eq.s32.totalorder %s24, 0
      %p87 = por %p85, %p86
      %p88 = scmp.ne.s32.totalorder %s76, %s77
      %p89 = scmp.eq.s32.totalorder %s25, 1
      %p90 = por %p88, %p89
      %p92 = scmp.ne.s32.totalorder %s77, %s91
      %p93 = scmp.eq.s32.totalorder %s25, 0
      %p94 = por %p92, %p93
      %s96 = sadd.s32 %s95, 1
      %p99 = scmp.eq.s32.totalorder %s19, 1
      %p100 = scmp.ne.s32.totalorder %s95, %s97
      %p101 = scmp.eq.s32.totalorder %s19, 0
      %p102 = por %p100, %p101
      %p103 = scmp.ne.s32.totalorder %s95, %s97
      %p104 = scmp.eq.s32.totalorder %s24, 1
      %p105 = por %p103, %p104
      %p106 = scmp.ne.s32.totalorder %s97, %s98
      %p107 = scmp.eq.s32.totalorder %s24, 0
      %p108 = por %p106, %p107
      %p109 = scmp.ne.s32.totalorder %s97, %s98
      %p110 = scmp.eq.s32.totalorder %s25, 1
      %p111 = por %p109, %p110
      %p113 = scmp.ne.s32.totalorder %s98, %s112
      %p114 = scmp.eq.s32.totalorder %s25, 0
      %p115 = por %p113, %p114
      %s117 = sadd.s32 %s116, 1
      %p120 = scmp.eq.s32.totalorder %s19, 1
      %p121 = scmp.ne.s32.totalorder %s116, %s118
      %p122 = scmp.eq.s32.totalorder %s19, 0
      %p123 = por %p121, %p122
      %p124 = scmp.ne.s32.totalorder %s116, %s118
      %p125 = scmp.eq.s32.totalorder %s24, 1
      %p126 = por %p124, %p125
      %p127 = scmp.ne.s32.totalorder %s118, %s119
      %p128 = scmp.eq.s32.totalorder %s24, 0
      %p129 = por %p127, %p128
      %p130 = scmp.ne.s32.totalorder %s118, %s119
      %p131 = scmp.eq.s32.totalorder %s25, 1
      %p132 = por %p130, %p131
      %p134 = scmp.ne.s32.totalorder %s119, %s133
      %p135 = scmp.eq.s32.totalorder %s25, 0
      %p136 = por %p134, %p135
      %s138 = sadd.s32 %s137, 1
      %p141 = scmp.eq.s32.totalorder %s19, 1
      %p142 = scmp.ne.s32.totalorder %s137, %s139
      %p143 = scmp.eq.s32.totalorder %s19, 0
      %p144 = por %p142, %p143
      %p145 = scmp.ne.s32.totalorder %s137, %s139
      %p146 = scmp.eq.s32.totalorder %s24, 1
      %p147 = por %p145, %p146
      %p148 = scmp.ne.s32.totalorder %s139, %s140
      %p149 = scmp.eq.s32.totalorder %s24, 0
      %p150 = por %p148, %p149
      %p151 = scmp.ne.s32.totalorder %s139, %s140
      %p152 = scmp.eq.s32.totalorder %s25, 1
      %p153 = por %p151, %p152
      %p155 = scmp.ne.s32.totalorder %s140, %s154
      %p156 = scmp.eq.s32.totalorder %s25, 0
      %p157 = por %p155, %p156
      %s159 = sadd.s32 %s158, 1
      %p162 = scmp.eq.s32.totalorder %s19, 1
      %p163 = scmp.ne.s32.totalorder %s158, %s160
      %p164 = scmp.eq.s32.totalorder %s19, 0
      %p165 = por %p163, %p164
      %p166 = scmp.ne.s32.totalorder %s158, %s160
      %p167 = scmp.eq.s32.totalorder %s24, 1
      %p168 = por %p166, %p167
      %p169 = scmp.ne.s32.totalorder %s160, %s161
      %p170 = scmp.eq.s32.totalorder %s24, 0
      %p171 = por %p169, %p170
      %p172 = scmp.ne.s32.totalorder %s160, %s161
      %p173 = scmp.eq.s32.totalorder %s25, 1
      %p174 = por %p172, %p173
      %p176 = scmp.ne.s32.totalorder %s161, %s175
      %p177 = scmp.eq.s32.totalorder %s25, 0
      %p178 = por %p176, %p177
      %s180 = sadd.s32 %s179, 1
      %p183 = scmp.eq.s32.totalorder %s19, 1
      %p184 = scmp.ne.s32.totalorder %s179, %s181
      %p185 = scmp.eq.s32.totalorder %s19, 0
      %p186 = por %p184, %p185
      %p187 = scmp.ne.s32.totalorder %s179, %s181
      %p188 = scmp.eq.s32.totalorder %s24, 1
      %p189 = por %p187, %p188
      %p190 = scmp.ne.s32.totalorder %s181, %s182
      %p191 = scmp.eq.s32.totalorder %s24, 0
      %p192 = por %p190, %p191
      %p193 = scmp.ne.s32.totalorder %s181, %s182
      %p194 = scmp.eq.s32.totalorder %s25, 1
      %p195 = por %p193, %p194
      %p197 = scmp.ne.s32.totalorder %s182, %s196
      %p198 = scmp.eq.s32.totalorder %s25, 0
      %p199 = por %p197, %p198
      %s200 = ssub.s32 %s19, %s26
      %p201 = scmp.eq.s32.totalorder %s200, 0
      %s203 = sadd.s32 %s202, 1
      %s204 = scalar_select %p201, %s202, %s203
      %p207 = pneg %p201
      %p208 = scmp.eq.s32.totalorder %s19, 1
      %p209 = por %p207, %p208
      %p210 = scmp.ne.s32.totalorder %s202, %s205
      %p211 = scmp.eq.s32.totalorder %s19, 0
      %p212 = por %p210, %p211
      %p213 = scmp.ne.s32.totalorder %s202, %s205
      %p214 = scmp.eq.s32.totalorder %s24, 1
      %p215 = por %p213, %p214
      %p216 = scmp.ne.s32.totalorder %s205, %s206
      %p217 = scmp.eq.s32.totalorder %s24, 0
      %p218 = por %p216, %p217
      %p219 = scmp.ne.s32.totalorder %s205, %s206
      %p220 = scmp.eq.s32.totalorder %s25, 1
      %p221 = por %p219, %p220
      %p223 = scmp.ne.s32.totalorder %s206, %s222
      %p224 = scmp.eq.s32.totalorder %s25, 0
      %p225 = por %p223, %p224
      %s226 = ssub.s32 %s19, %s26
      %p227 = scmp.eq.s32.totalorder %s226, 0
      %s229 = sadd.s32 %s228, 1
      %s230 = scalar_select %p227, %s228, %s229
      %p233 = pneg %p227
      %p234 = scmp.eq.s32.totalorder %s19, 1
      %p235 = por %p233, %p234
      %p236 = scmp.ne.s32.totalorder %s228, %s231
      %p237 = scmp.eq.s32.totalorder %s19, 0
      %p238 = por %p236, %p237
      %p239 = scmp.ne.s32.totalorder %s228, %s231
      %p240 = scmp.eq.s32.totalorder %s24, 1
      %p241 = por %p239, %p240
      %p242 = scmp.ne.s32.totalorder %s231, %s232
      %p243 = scmp.eq.s32.totalorder %s24, 0
      %p244 = por %p242, %p243
      %p245 = scmp.ne.s32.totalorder %s231, %s232
      %p246 = scmp.eq.s32.totalorder %s25, 1
      %p247 = por %p245, %p246
      %p249 = scmp.ne.s32.totalorder %s232, %s248
      %p250 = scmp.eq.s32.totalorder %s25, 0
      %p251 = por %p249, %p250
      %p252 = scmp.le.s32.totalorder 1, %s19
      %p253 = scmp.lt.s32.totalorder %s19, 3
      %p254 = pnand %p252, %p253
      %p255 = pneg %p254
      // Predicated region
      $region9: #{tpu_custom_call.1} parent=5 // pred_check
        _
      $region10: #{tpu_custom_call.1} parent=5 // pred_check_branch
        %257 = sbr.rel (%p254) target = $region12
      $region11: #{tpu_custom_call.1} parent=5 // pred_region
        %s258 = ssub.s32 %s19, 1
        // Predicated region
        $region13: #{tpu_custom_call.1} parent=11 // pred_check
          %p259 = pneg %p66
        $region14: #{tpu_custom_call.1} parent=11 // pred_check_branch
          %261 = sbr.rel (%p259) target = $region16
        $region15: #{tpu_custom_call.1} parent=11 // pred_region
          _
        $region16: #{tpu_custom_call.1} parent=11 // pred_fallthru
          _
        // Predicated region
        $region17: #{tpu_custom_call.1} parent=11 // pred_check
          %p262 = pneg %p87
        $region18: #{tpu_custom_call.1} parent=11 // pred_check_branch
          %264 = sbr.rel (%p262) target = $region20
        $region19: #{tpu_custom_call.1} parent=11 // pred_region
          _
        $region20: #{tpu_custom_call.1} parent=11 // pred_fallthru
          _
        // Predicated region
        $region21: #{tpu_custom_call.1} parent=11 // pred_check
          %p265 = pneg %p108
        $region22: #{tpu_custom_call.1} parent=11 // pred_check_branch
          %267 = sbr.rel (%p265) target = $region24
        $region23: #{tpu_custom_call.1} parent=11 // pred_region
          _
        $region24: #{tpu_custom_call.1} parent=11 // pred_fallthru
          _
        // Predicated region
        $region25: #{tpu_custom_call.1} parent=11 // pred_check
          %p268 = pneg %p129
        $region26: #{tpu_custom_call.1} parent=11 // pred_check_branch
          %270 = sbr.rel (%p268) target = $region28
        $region27: #{tpu_custom_call.1} parent=11 // pred_region
          _
        $region28: #{tpu_custom_call.1} parent=11 // pred_fallthru
          _
        // Predicated region
        $region29: #{tpu_custom_call.1} parent=11 // pred_check
          %p271 = pneg %p150
        $region30: #{tpu_custom_call.1} parent=11 // pred_check_branch
          %273 = sbr.rel (%p271) target = $region32
        $region31: #{tpu_custom_call.1} parent=11 // pred_region
          _
        $region32: #{tpu_custom_call.1} parent=11 // pred_fallthru
          _
        // Predicated region
        $region33: #{tpu_custom_call.1} parent=11 // pred_check
          %p274 = pneg %p171
        $region34: #{tpu_custom_call.1} parent=11 // pred_check_branch
          %276 = sbr.rel (%p274) target = $region36
        $region35: #{tpu_custom_call.1} parent=11 // pred_region
          _
        $region36: #{tpu_custom_call.1} parent=11 // pred_fallthru
          _
        // Predicated region
        $region37: #{tpu_custom_call.1} parent=11 // pred_check
          %p277 = pneg %p192
        $region38: #{tpu_custom_call.1} parent=11 // pred_check_branch
          %279 = sbr.rel (%p277) target = $region40
        $region39: #{tpu_custom_call.1} parent=11 // pred_region
          _
        $region40: #{tpu_custom_call.1} parent=11 // pred_fallthru
          _
      $region12: #{tpu_custom_call.1} parent=5 // pred_fallthru
        _
      %p280 = scmp.lt.s32.totalorder %s19, 2
      // Predicated region
      $region41: #{tpu_custom_call.1} parent=5 // pred_check
        %p281 = pneg %p280
      $region42: #{tpu_custom_call.1} parent=5 // pred_check_branch
        %283 = sbr.rel (%p281) target = $region44
      $region43: #{tpu_custom_call.1} parent=5 // pred_region
        // Predicated region
        $region45: #{tpu_custom_call.1} parent=43 // pred_check
          %p284 = pneg %p39
        $region46: #{tpu_custom_call.1} parent=43 // pred_check_branch
          %286 = sbr.rel (%p284) target = $region48
        $region47: #{tpu_custom_call.1} parent=43 // pred_region
          %p287 = scmp.lt.s32.totalorder %s19, 1
          %s288 = scalar_select %p287, %s19, 1
          %s289 = smul.addr %s288, 2
          %s290 = smul.addr %s289, 4
          %s291 = scalar_lea.vmem %s0, %s290
        $region48: #{tpu_custom_call.1} parent=43 // pred_fallthru
          _
      $region44: #{tpu_custom_call.1} parent=5 // pred_fallthru
        _
      %p292 = scmp.le.s32.totalorder 1, %s19
      %p293 = scmp.lt.s32.totalorder %s19, 3
      %p294 = pnand %p292, %p293
      %p295 = pneg %p294
      // Predicated region
      $region49: #{tpu_custom_call.1} parent=5 // pred_check
        _
      $region50: #{tpu_custom_call.1} parent=5 // pred_check_branch
        %297 = sbr.rel (%p294) target = $region52
      $region51: #{tpu_custom_call.1} parent=5 // pred_region
        %s298 = ssub.s32 %s19, 1
        %p299 = scmp.lt.s32.totalorder %s24, 1
        %s300 = scalar_select %p299, %s24, 1
        %s301 = smul.addr %s300, 2
        %s302 = smul.addr %s301, 4
        %s303 = scalar_lea.vmem %s0, %s302
        %p304 = pneg %p45
        %p305 = pneg %p42
        %p306 = pneg %p66
        %p307 = pneg %p63
        %p308 = pneg %p87
        %p309 = pneg %p84
        %p310 = pneg %p108
        %p311 = pneg %p105
        %p312 = pneg %p129
        %p313 = pneg %p126
        %p314 = pneg %p150
        %p315 = pneg %p147
        %p316 = pneg %p171
        %p317 = pneg %p168
        %p318 = pneg %p192
        %p319 = pneg %p189
        %p320 = pneg %p218
        %p321 = pneg %p215
        %s322 = sand.u32 %s205, 1
        %s323 = scalar_lea.sflag [#allocation5], %s322
        %s324 = sand.u32 %s205, 1
        %s325 = smul.addr %s324, 8
        %s326 = scalar_lea.vmem [#allocation4], %s325
        %p327 = pneg %p244
        %p328 = pneg %p241
        %p329 = scmp.lt.s32.totalorder %s24, 1
        %s330 = scalar_select %p329, %s24, 1
        %s331 = smul.addr %s330, 4
        %s332 = scalar_lea.vmem %s9, %s331
        %p333 = scmp.lt.s32.totalorder %s24, 1
        %s334 = scalar_select %p333, %s24, 1
        %s335 = smul.addr %s334, 2
        %s336 = smul.addr %s335, 4
        %s337 = scalar_lea.vmem %s0, %s336
        %p338 = scmp.lt.s32.totalorder %s24, 1
        %s339 = scalar_select %p338, %s24, 1
        %s340 = smul.addr %s339, 4
        %s341 = scalar_lea.vmem %s9, %s340
        %v342 = vld [vmem:[%s337] sm:$0xff]
        %v343 = vlaneseq
        %v344 = vand.u32 %v343, 127
        %v345 = vadd.s32 %v344, 128
        %vm346 = vcmp.lt.s32.totalorder %v344, 0
        %v347 = vsub.s32 0, %v344
        %v348 = vsel %vm346, %v347, %v344
        %v349 = vshrl.u32 %v348, 4
        %v350 = vand.u32 %v348, 15
        %v351 = vsub.s32 0, %v350
        %v352 = vsel %vm346, %v351, %v350
        %vm353 = vcmp.lt.s32.totalorder %v345, 0
        %v354 = vsub.s32 0, %v345
        %v355 = vsel %vm353, %v354, %v345
        %v356 = vshrl.u32 %v355, 4
        %v357 = vand.u32 %v355, 15
        %v358 = vsub.s32 0, %v357
        %v359 = vsel %vm353, %v358, %v357
        %vm360 = vcmp.ne.s32.totalorder %v352, 0
        %vm361 = vcmp.ne.s32.totalorder %v359, 0
        %vm362 = vcmp.lt.s32.totalorder %v352, 0
        %vm363 = vcmp.lt.s32.totalorder %v359, 0
        %vm364 = vmand %vm362, %vm360
        %vm365 = vmand %vm363, %vm361
        %v366 = vadd.s32 %v352, 16
        %v367 = vadd.s32 %v359, 16
        %v368 = vsel %vm364, %v366, %v352
        %v369 = vsel %vm365, %v367, %v359
        %vm370 = vcmask 134144
        %371 = vst.msk [vmem:[#allocation2] sm:$0xf] %vm370, 0.0
        %vm372 = vcmask 273544
        %373 = vst.msk [vmem:[#allocation2 + $0x8] sm:$0xf] %vm372, 0.0
        %375 = vrot.lane.b32.xlu0 %v342, 17
        %v376 = vpop.permute.xlu0 %375
        %v377 = vrot.slane %v376, 4
        %vm378 = vcmask 138240
        %v379 = vsel %vm378, %v377, %v376
        %vm382 = vcmask 1043592
        %vm383 = vcmask 1047556
        %vm384 = vmor %vm383, %vm382
        %385 = vst.msk [vmem:[#allocation2] sm:$0xff] %vm384, %v379
        %386 = vst.msk [vmem:[#allocation2 + $0x8] sm:$0xf] %vm370, %v377
        %v387 = vld [vmem:[#allocation2] sm:$0xff]
        %vm388 = vcmp.ge.s32.totalorder %v368, 1
        %vm389 = vcmp.ge.s32.totalorder %v369, 1
        %v390 = vsel %vm388, 1, 0
        %v391 = vsel %vm389, 1, 0
        %vm392 = vcmp.eq.s32.totalorder %v390, 1
        %vm393 = vcmp.eq.s32.totalorder %v391, 1
        %395 = vst [vmem:[#allocation1] ss:$2 sm:$0xff] %v387
        %v396 = vld.sshfl [vmem:[#allocation1] sm:$0xff pattern:$0x75316420]
        %v397 = vld.sshfl [vmem:[#allocation1 + $0x8] sm:$0xff pattern:$0x75316420]
        %v400 = vsel %vm392, %v396, 0.0
        %v401 = vsel %vm393, %v397, 0.0
        %v402 = vld [vmem:[%s1] sm:$0xf]
        %v403 = vld [vmem:[#allocation2] sm:$0xff]
        %v404 = vld [vmem:[#allocation2 + $0x8] sm:$0xf]
        %s405 = scalar_lea.vmem %s1, 4
        %v406 = vld [vmem:[%s405] sm:$0xf]
        %409 = vst [vmem:[#allocation1] ss:$2 sm:$0xff] %v403
        %s410 = scalar_lea.vmem [#allocation1], 16
        %411 = vst [vmem:[%s410] ss:$2 sm:$0xff] %v404
        %v412 = vld.sshfl [vmem:[#allocation1] sm:$0xff pattern:$0x75316420]
        %v413 = vld.sshfl [vmem:[#allocation1 + $0x8] sm:$0xff pattern:$0x75316420]
        %v414 = vld.sshfl [vmem:[#allocation1 + $0x10] sm:$0xff pattern:$0x75316420]
        %415 = vrot.lane.b32.xlu0 %v412, 127
        %v416 = vpop.permute.xlu0 %415
        %417 = vrot.lane.b32.xlu0 %v413, 127
        %v418 = vpop.permute.xlu0 %417
        %419 = vrot.lane.b32.xlu0 %v414, 127
        %v420 = vpop.permute.xlu0 %419
        %vm421 = vcmask 1039360
        %v422 = vsel %vm421, %v416, %v418
        %v423 = vsel %vm421, %v418, %v420
        %vm424 = vcmask 31744
        %v426 = vsel %vm424, %v406, 0
        %vm428 = vcmask 1043456
        %v429 = vsel %vm428, %v422, 0
        %v431 = vsel %vm428, %v423, 0
        %433 = vmatpush.msra.mxu0 0.0
        %434 = vmatpush.msra.mxu0 0.0
        %435 = vmatpush.msra.mxu0 0.0
        %436 = vmatpush.msra.mxu0 0.0
        %437 = vmatpush.msra.mxu0 0.0
        %438 = vmatpush.msra.mxu0 0.0
        %439 = vmatpush.msra.mxu0 0.0
        %440 = vmatpush.msra.mxu0 0.0
        %441 = vmatpush.msra.mxu0 0.0
        %442 = vmatpush.msra.mxu0 0.0
        %443 = vmatpush.msra.mxu0 0.0
        %444 = vmatpush.msra.mxu0 0.0
        %445 = vmatpush.msra.mxu0 0.0
        %446 = vmatpush.msra.mxu0 0.0
        %447 = vmatpush.msra.mxu0 0.0
        %448 = vmatpush.msra.mxu0 %v429
        %449 = vmatmul.f32.gmra.mxu0 %v426
        %v450 = vpop.f32.mrf.mxu0
        %v451 = vadd.f32 0.0, %v450
        %452 = vdwg.mxu0
        %453 = vmatpush.msra.mxu0 0.0
        %454 = vmatpush.msra.mxu0 0.0
        %455 = vmatpush.msra.mxu0 0.0
        %456 = vmatpush.msra.mxu0 0.0
        %457 = vmatpush.msra.mxu0 0.0
        %458 = vmatpush.msra.mxu0 0.0
        %459 = vmatpush.msra.mxu0 0.0
        %460 = vmatpush.msra.mxu0 0.0
        %461 = vmatpush.msra.mxu0 0.0
        %462 = vmatpush.msra.mxu0 0.0
        %463 = vmatpush.msra.mxu0 0.0
        %464 = vmatpush.msra.mxu0 0.0
        %465 = vmatpush.msra.mxu0 0.0
        %466 = vmatpush.msra.mxu0 0.0
        %467 = vmatpush.msra.mxu0 0.0
        %468 = vmatpush.msra.mxu0 %v431
        %469 = vmatmul.f32.gmra.mxu0 %v426
        %v470 = vpop.f32.mrf.mxu0
        %v471 = vadd.f32 0.0, %v470
        %472 = vdwg.mxu0
        %v474 = vsel %vm424, %v402, 0
        %v477 = vsel %vm428, %v400, 0
        %v480 = vsel %vm428, %v401, 0
        %482 = vmatpush.msra.mxu0 0.0
        %483 = vmatpush.msra.mxu0 0.0
        %484 = vmatpush.msra.mxu0 0.0
        %485 = vmatpush.msra.mxu0 0.0
        %486 = vmatpush.msra.mxu0 0.0
        %487 = vmatpush.msra.mxu0 0.0
        %488 = vmatpush.msra.mxu0 0.0
        %489 = vmatpush.msra.mxu0 0.0
        %490 = vmatpush.msra.mxu0 0.0
        %491 = vmatpush.msra.mxu0 0.0
        %492 = vmatpush.msra.mxu0 0.0
        %493 = vmatpush.msra.mxu0 0.0
        %494 = vmatpush.msra.mxu0 0.0
        %495 = vmatpush.msra.mxu0 0.0
        %496 = vmatpush.msra.mxu0 0.0
        %497 = vmatpush.msra.mxu0 %v477
        %498 = vmatmul.f32.gmra.mxu0 %v474
        %v499 = vpop.f32.mrf.mxu0
        %v500 = vadd.f32 %v451, %v499
        %501 = vdwg.mxu0
        %502 = vmatpush.msra.mxu0 0.0
        %503 = vmatpush.msra.mxu0 0.0
        %504 = vmatpush.msra.mxu0 0.0
        %505 = vmatpush.msra.mxu0 0.0
        %506 = vmatpush.msra.mxu0 0.0
        %507 = vmatpush.msra.mxu0 0.0
        %508 = vmatpush.msra.mxu0 0.0
        %509 = vmatpush.msra.mxu0 0.0
        %510 = vmatpush.msra.mxu0 0.0
        %511 = vmatpush.msra.mxu0 0.0
        %512 = vmatpush.msra.mxu0 0.0
        %513 = vmatpush.msra.mxu0 0.0
        %514 = vmatpush.msra.mxu0 0.0
        %515 = vmatpush.msra.mxu0 0.0
        %516 = vmatpush.msra.mxu0 0.0
        %517 = vmatpush.msra.mxu0 %v480
        %518 = vmatmul.f32.gmra.mxu0 %v474
        %v519 = vpop.f32.mrf.mxu0
        %v520 = vadd.f32 %v471, %v519
        %521 = vdwg.mxu0
        %v522 = vld [vmem:[#allocation2] sm:$0xff]
        %v523 = vld [vmem:[#allocation2 + $0x8] sm:$0xf]
        %vm524 = vcmp.le.s32.totalorder %v368, 14
        %vm525 = vcmp.le.s32.totalorder %v369, 14
        %v526 = vsel %vm524, 1, 0
        %v527 = vsel %vm525, 1, 0
        %vm528 = vcmp.eq.s32.totalorder %v526, 1
        %vm529 = vcmp.eq.s32.totalorder %v527, 1
        %532 = vst [vmem:[#allocation1] ss:$2 sm:$0xff] %v522
        %s533 = scalar_lea.vmem [#allocation1], 16
        %534 = vst [vmem:[%s533] ss:$2 sm:$0xff] %v523
        %v535 = vld.sshfl [vmem:[#allocation1] sm:$0xff pattern:$0x75316420]
        %v536 = vld.sshfl [vmem:[#allocation1 + $0x8] sm:$0xff pattern:$0x75316420]
        %v537 = vld.sshfl [vmem:[#allocation1 + $0x10] sm:$0xff pattern:$0x75316420]
        %538 = vrot.lane.b32.xlu0 %v535, 126
        %v539 = vpop.permute.xlu0 %538
        %540 = vrot.lane.b32.xlu0 %v536, 126
        %v541 = vpop.permute.xlu0 %540
        %542 = vrot.lane.b32.xlu0 %v537, 126
        %v543 = vpop.permute.xlu0 %542
        %vm544 = vcmask 1031168
        %v545 = vsel %vm544, %v539, %v541
        %v546 = vsel %vm544, %v541, %v543
        %v549 = vsel %vm528, %v545, 0.0
        %v550 = vsel %vm529, %v546, 0.0
        %s551 = scalar_lea.vmem %s1, 8
        %v552 = vld [vmem:[%s551] sm:$0xf]
        %v554 = vsel %vm424, %v552, 0
        %v557 = vsel %vm428, %v549, 0
        %v560 = vsel %vm428, %v550, 0
        %562 = vmatpush.msra.mxu0 0.0
        %563 = vmatpush.msra.mxu0 0.0
        %564 = vmatpush.msra.mxu0 0.0
        %565 = vmatpush.msra.mxu0 0.0
        %566 = vmatpush.msra.mxu0 0.0
        %567 = vmatpush.msra.mxu0 0.0
        %568 = vmatpush.msra.mxu0 0.0
        %569 = vmatpush.msra.mxu0 0.0
        %570 = vmatpush.msra.mxu0 0.0
        %571 = vmatpush.msra.mxu0 0.0
        %572 = vmatpush.msra.mxu0 0.0
        %573 = vmatpush.msra.mxu0 0.0
        %574 = vmatpush.msra.mxu0 0.0
        %575 = vmatpush.msra.mxu0 0.0
        %576 = vmatpush.msra.mxu0 0.0
        %577 = vmatpush.msra.mxu0 %v557
        %578 = vmatmul.f32.gmra.mxu0 %v554
        %v579 = vpop.f32.mrf.mxu0
        %v580 = vadd.f32 0.0, %v579
        %581 = vdwg.mxu0
        %582 = vmatpush.msra.mxu0 0.0
        %583 = vmatpush.msra.mxu0 0.0
        %584 = vmatpush.msra.mxu0 0.0
        %585 = vmatpush.msra.mxu0 0.0
        %586 = vmatpush.msra.mxu0 0.0
        %587 = vmatpush.msra.mxu0 0.0
        %588 = vmatpush.msra.mxu0 0.0
        %589 = vmatpush.msra.mxu0 0.0
        %590 = vmatpush.msra.mxu0 0.0
        %591 = vmatpush.msra.mxu0 0.0
        %592 = vmatpush.msra.mxu0 0.0
        %593 = vmatpush.msra.mxu0 0.0
        %594 = vmatpush.msra.mxu0 0.0
        %595 = vmatpush.msra.mxu0 0.0
        %596 = vmatpush.msra.mxu0 0.0
        %597 = vmatpush.msra.mxu0 %v560
        %598 = vmatmul.f32.gmra.mxu0 %v554
        %v599 = vpop.f32.mrf.mxu0
        %v600 = vadd.f32 0.0, %v599
        %601 = vdwg.mxu0
        %v602 = vadd.f32 %v500, %v580
        %v603 = vadd.f32 %v520, %v600
        %v604 = vld [vmem:[#allocation2] sm:$0xff]
        %v605 = vld [vmem:[#allocation2 + $0x8] sm:$0xf]
        %608 = vst [vmem:[#allocation1] ss:$2 sm:$0xff] %v604
        %s609 = scalar_lea.vmem [#allocation1], 16
        %610 = vst [vmem:[%s609] ss:$2 sm:$0xff] %v605
        %v611 = vld.sshfl [vmem:[#allocation1] sm:$0xff pattern:$0x75316420]
        %v612 = vld.sshfl [vmem:[#allocation1 + $0x8] sm:$0xff pattern:$0x75316420]
        %v613 = vld.sshfl [vmem:[#allocation1 + $0x10] sm:$0xff pattern:$0x75316420]
        %614 = vrot.lane.b32.xlu0 %v611, 112
        %v615 = vpop.permute.xlu0 %614
        %616 = vrot.lane.b32.xlu0 %v612, 112
        %v617 = vpop.permute.xlu0 %616
        %618 = vrot.lane.b32.xlu0 %v613, 112
        %v619 = vpop.permute.xlu0 %618
        %vm620 = vcmask 916480
        %v621 = vsel %vm620, %v615, %v617
        %v622 = vsel %vm620, %v617, %v619
        %v625 = vsel %vm392, %v621, 0.0
        %v626 = vsel %vm393, %v622, 0.0
        %s627 = scalar_lea.vmem %s1, 12
        %v628 = vld [vmem:[%s627] sm:$0xf]
        %v630 = vsel %vm424, %v628, 0
        %v633 = vsel %vm428, %v625, 0
        %v636 = vsel %vm428, %v626, 0
        %638 = vmatpush.msra.mxu0 0.0
        %639 = vmatpush.msra.mxu0 0.0
        %640 = vmatpush.msra.mxu0 0.0
        %641 = vmatpush.msra.mxu0 0.0
        %642 = vmatpush.msra.mxu0 0.0
        %643 = vmatpush.msra.mxu0 0.0
        %644 = vmatpush.msra.mxu0 0.0
        %645 = vmatpush.msra.mxu0 0.0
        %646 = vmatpush.msra.mxu0 0.0
        %647 = vmatpush.msra.mxu0 0.0
        %648 = vmatpush.msra.mxu0 0.0
        %649 = vmatpush.msra.mxu0 0.0
        %650 = vmatpush.msra.mxu0 0.0
        %651 = vmatpush.msra.mxu0 0.0
        %652 = vmatpush.msra.mxu0 0.0
        %653 = vmatpush.msra.mxu0 %v633
        %654 = vmatmul.f32.gmra.mxu0 %v630
        %v655 = vpop.f32.mrf.mxu0
        %v656 = vadd.f32 0.0, %v655
        %657 = vdwg.mxu0
        %658 = vmatpush.msra.mxu0 0.0
        %659 = vmatpush.msra.mxu0 0.0
        %660 = vmatpush.msra.mxu0 0.0
        %661 = vmatpush.msra.mxu0 0.0
        %662 = vmatpush.msra.mxu0 0.0
        %663 = vmatpush.msra.mxu0 0.0
        %664 = vmatpush.msra.mxu0 0.0
        %665 = vmatpush.msra.mxu0 0.0
        %666 = vmatpush.msra.mxu0 0.0
        %667 = vmatpush.msra.mxu0 0.0
        %668 = vmatpush.msra.mxu0 0.0
        %669 = vmatpush.msra.mxu0 0.0
        %670 = vmatpush.msra.mxu0 0.0
        %671 = vmatpush.msra.mxu0 0.0
        %672 = vmatpush.msra.mxu0 0.0
        %673 = vmatpush.msra.mxu0 %v636
        %674 = vmatmul.f32.gmra.mxu0 %v630
        %v675 = vpop.f32.mrf.mxu0
        %v676 = vadd.f32 0.0, %v675
        %677 = vdwg.mxu0
        %v678 = vadd.f32 %v602, %v656
        %v679 = vadd.f32 %v603, %v676
        %v680 = vld [vmem:[#allocation2] sm:$0xff]
        %v681 = vld [vmem:[#allocation2 + $0x8] sm:$0xf]
        %s682 = scalar_lea.vmem %s1, 16
        %v683 = vld [vmem:[%s682] sm:$0xf]
        %686 = vst [vmem:[#allocation1] ss:$2 sm:$0xff] %v680
        %s687 = scalar_lea.vmem [#allocation1], 16
        %688 = vst [vmem:[%s687] ss:$2 sm:$0xff] %v681
        %v689 = vld.sshfl [vmem:[#allocation1] sm:$0xff pattern:$0x75316420]
        %v690 = vld.sshfl [vmem:[#allocation1 + $0x8] sm:$0xff pattern:$0x75316420]
        %v691 = vld.sshfl [vmem:[#allocation1 + $0x10] sm:$0xff pattern:$0x75316420]
        %692 = vrot.lane.b32.xlu0 %v689, 111
        %v693 = vpop.permute.xlu0 %692
        %694 = vrot.lane.b32.xlu0 %v690, 111
        %v695 = vpop.permute.xlu0 %694
        %696 = vrot.lane.b32.xlu0 %v691, 111
        %v697 = vpop.permute.xlu0 %696
        %vm698 = vcmask 908288
        %v699 = vsel %vm698, %v693, %v695
        %v700 = vsel %vm698, %v695, %v697
        %v702 = vsel %vm424, %v683, 0
        %v704 = vsel %vm428, %v699, 0
        %v706 = vsel %vm428, %v700, 0
        %708 = vmatpush.msra.mxu0 0.0
        %709 = vmatpush.msra.mxu0 0.0
        %710 = vmatpush.msra.mxu0 0.0
        %711 = vmatpush.msra.mxu0 0.0
        %712 = vmatpush.msra.mxu0 0.0
        %713 = vmatpush.msra.mxu0 0.0
        %714 = vmatpush.msra.mxu0 0.0
        %715 = vmatpush.msra.mxu0 0.0
        %716 = vmatpush.msra.mxu0 0.0
        %717 = vmatpush.msra.mxu0 0.0
        %718 = vmatpush.msra.mxu0 0.0
        %719 = vmatpush.msra.mxu0 0.0
        %720 = vmatpush.msra.mxu0 0.0
        %721 = vmatpush.msra.mxu0 0.0
        %722 = vmatpush.msra.mxu0 0.0
        %723 = vmatpush.msra.mxu0 %v704
        %724 = vmatmul.f32.gmra.mxu0 %v702
        %v725 = vpop.f32.mrf.mxu0
        %v726 = vadd.f32 0.0, %v725
        %727 = vdwg.mxu0
        %728 = vmatpush.msra.mxu0 0.0
        %729 = vmatpush.msra.mxu0 0.0
        %730 = vmatpush.msra.mxu0 0.0
        %731 = vmatpush.msra.mxu0 0.0
        %732 = vmatpush.msra.mxu0 0.0
        %733 = vmatpush.msra.mxu0 0.0
        %734 = vmatpush.msra.mxu0 0.0
        %735 = vmatpush.msra.mxu0 0.0
        %736 = vmatpush.msra.mxu0 0.0
        %737 = vmatpush.msra.mxu0 0.0
        %738 = vmatpush.msra.mxu0 0.0
        %739 = vmatpush.msra.mxu0 0.0
        %740 = vmatpush.msra.mxu0 0.0
        %741 = vmatpush.msra.mxu0 0.0
        %742 = vmatpush.msra.mxu0 0.0
        %743 = vmatpush.msra.mxu0 %v706
        %744 = vmatmul.f32.gmra.mxu0 %v702
        %v745 = vpop.f32.mrf.mxu0
        %v746 = vadd.f32 0.0, %v745
        %747 = vdwg.mxu0
        %v748 = vadd.f32 %v678, %v726
        %v749 = vadd.f32 %v679, %v746
        %v750 = vld [vmem:[#allocation2] sm:$0xff]
        %v751 = vld [vmem:[#allocation2 + $0x8] sm:$0xf]
        %754 = vst [vmem:[#allocation1] ss:$2 sm:$0xff] %v750
        %s755 = scalar_lea.vmem [#allocation1], 16
        %756 = vst [vmem:[%s755] ss:$2 sm:$0xff] %v751
        %v757 = vld.sshfl [vmem:[#allocation1] sm:$0xff pattern:$0x75316420]
        %v758 = vld.sshfl [vmem:[#allocation1 + $0x8] sm:$0xff pattern:$0x75316420]
        %v759 = vld.sshfl [vmem:[#allocation1 + $0x10] sm:$0xff pattern:$0x75316420]
        %760 = vrot.lane.b32.xlu0 %v757, 110
        %v761 = vpop.permute.xlu0 %760
        %762 = vrot.lane.b32.xlu0 %v758, 110
        %v763 = vpop.permute.xlu0 %762
        %764 = vrot.lane.b32.xlu0 %v759, 110
        %v765 = vpop.permute.xlu0 %764
        %vm766 = vcmask 900096
        %v767 = vsel %vm766, %v761, %v763
        %v768 = vsel %vm766, %v763, %v765
        %v771 = vsel %vm528, %v767, 0.0
        %v772 = vsel %vm529, %v768, 0.0
        %s773 = scalar_lea.vmem %s1, 20
        %v774 = vld [vmem:[%s773] sm:$0xf]
        %v776 = vsel %vm424, %v774, 0
        %v779 = vsel %vm428, %v771, 0
        %v782 = vsel %vm428, %v772, 0
        %784 = vmatpush.msra.mxu0 0.0
        %785 = vmatpush.msra.mxu0 0.0
        %786 = vmatpush.msra.mxu0 0.0
        %787 = vmatpush.msra.mxu0 0.0
        %788 = vmatpush.msra.mxu0 0.0
        %789 = vmatpush.msra.mxu0 0.0
        %790 = vmatpush.msra.mxu0 0.0
        %791 = vmatpush.msra.mxu0 0.0
        %792 = vmatpush.msra.mxu0 0.0
        %793 = vmatpush.msra.mxu0 0.0
        %794 = vmatpush.msra.mxu0 0.0
        %795 = vmatpush.msra.mxu0 0.0
        %796 = vmatpush.msra.mxu0 0.0
        %797 = vmatpush.msra.mxu0 0.0
        %798 = vmatpush.msra.mxu0 0.0
        %799 = vmatpush.msra.mxu0 %v779
        %800 = vmatmul.f32.gmra.mxu0 %v776
        %v801 = vpop.f32.mrf.mxu0
        %v802 = vadd.f32 0.0, %v801
        %803 = vdwg.mxu0
        %804 = vmatpush.msra.mxu0 0.0
        %805 = vmatpush.msra.mxu0 0.0
        %806 = vmatpush.msra.mxu0 0.0
        %807 = vmatpush.msra.mxu0 0.0
        %808 = vmatpush.msra.mxu0 0.0
        %809 = vmatpush.msra.mxu0 0.0
        %810 = vmatpush.msra.mxu0 0.0
        %811 = vmatpush.msra.mxu0 0.0
        %812 = vmatpush.msra.mxu0 0.0
        %813 = vmatpush.msra.mxu0 0.0
        %814 = vmatpush.msra.mxu0 0.0
        %815 = vmatpush.msra.mxu0 0.0
        %816 = vmatpush.msra.mxu0 0.0
        %817 = vmatpush.msra.mxu0 0.0
        %818 = vmatpush.msra.mxu0 0.0
        %819 = vmatpush.msra.mxu0 %v782
        %820 = vmatmul.f32.gmra.mxu0 %v776
        %v821 = vpop.f32.mrf.mxu0
        %v822 = vadd.f32 0.0, %v821
        %823 = vdwg.mxu0
        %v824 = vadd.f32 %v748, %v802
        %v825 = vadd.f32 %v749, %v822
        %v826 = vld [vmem:[#allocation2] sm:$0xff]
        %v827 = vld [vmem:[#allocation2 + $0x8] sm:$0xf]
        %830 = vst [vmem:[#allocation1] ss:$2 sm:$0xff] %v826
        %s831 = scalar_lea.vmem [#allocation1], 16
        %832 = vst [vmem:[%s831] ss:$2 sm:$0xff] %v827
        %v833 = vld.sshfl [vmem:[#allocation1] sm:$0xff pattern:$0x75316420]
        %v834 = vld.sshfl [vmem:[#allocation1 + $0x8] sm:$0xff pattern:$0x75316420]
        %v835 = vld.sshfl [vmem:[#allocation1 + $0x10] sm:$0xff pattern:$0x75316420]
        %836 = vrot.lane.b32.xlu0 %v833, 96
        %v837 = vpop.permute.xlu0 %836
        %838 = vrot.lane.b32.xlu0 %v834, 96
        %v839 = vpop.permute.xlu0 %838
        %840 = vrot.lane.b32.xlu0 %v835, 96
        %v841 = vpop.permute.xlu0 %840
        %vm842 = vcmask 785408
        %v843 = vsel %vm842, %v837, %v839
        %v844 = vsel %vm842, %v839, %v841
        %v847 = vsel %vm392, %v843, 0.0
        %v848 = vsel %vm393, %v844, 0.0
        %s849 = scalar_lea.vmem %s1, 24
        %v850 = vld [vmem:[%s849] sm:$0xf]
        %v852 = vsel %vm424, %v850, 0
        %v855 = vsel %vm428, %v847, 0
        %v858 = vsel %vm428, %v848, 0
        %860 = vmatpush.msra.mxu0 0.0
        %861 = vmatpush.msra.mxu0 0.0
        %862 = vmatpush.msra.mxu0 0.0
        %863 = vmatpush.msra.mxu0 0.0
        %864 = vmatpush.msra.mxu0 0.0
        %865 = vmatpush.msra.mxu0 0.0
        %866 = vmatpush.msra.mxu0 0.0
        %867 = vmatpush.msra.mxu0 0.0
        %868 = vmatpush.msra.mxu0 0.0
        %869 = vmatpush.msra.mxu0 0.0
        %870 = vmatpush.msra.mxu0 0.0
        %871 = vmatpush.msra.mxu0 0.0
        %872 = vmatpush.msra.mxu0 0.0
        %873 = vmatpush.msra.mxu0 0.0
        %874 = vmatpush.msra.mxu0 0.0
        %875 = vmatpush.msra.mxu0 %v855
        %876 = vmatmul.f32.gmra.mxu0 %v852
        %v877 = vpop.f32.mrf.mxu0
        %v878 = vadd.f32 0.0, %v877
        %879 = vdwg.mxu0
        %880 = vmatpush.msra.mxu0 0.0
        %881 = vmatpush.msra.mxu0 0.0
        %882 = vmatpush.msra.mxu0 0.0
        %883 = vmatpush.msra.mxu0 0.0
        %884 = vmatpush.msra.mxu0 0.0
        %885 = vmatpush.msra.mxu0 0.0
        %886 = vmatpush.msra.mxu0 0.0
        %887 = vmatpush.msra.mxu0 0.0
        %888 = vmatpush.msra.mxu0 0.0
        %889 = vmatpush.msra.mxu0 0.0
        %890 = vmatpush.msra.mxu0 0.0
        %891 = vmatpush.msra.mxu0 0.0
        %892 = vmatpush.msra.mxu0 0.0
        %893 = vmatpush.msra.mxu0 0.0
        %894 = vmatpush.msra.mxu0 0.0
        %895 = vmatpush.msra.mxu0 %v858
        %896 = vmatmul.f32.gmra.mxu0 %v852
        %v897 = vpop.f32.mrf.mxu0
        %v898 = vadd.f32 0.0, %v897
        %899 = vdwg.mxu0
        %v900 = vadd.f32 %v824, %v878
        %v901 = vadd.f32 %v825, %v898
        %v902 = vld [vmem:[#allocation2] sm:$0xff]
        %v903 = vld [vmem:[#allocation2 + $0x8] sm:$0xf]
        %s904 = scalar_lea.vmem %s1, 28
        %v905 = vld [vmem:[%s904] sm:$0xf]
        %908 = vst [vmem:[#allocation1] ss:$2 sm:$0xff] %v902
        %s909 = scalar_lea.vmem [#allocation1], 16
        %910 = vst [vmem:[%s909] ss:$2 sm:$0xff] %v903
        %v911 = vld.sshfl [vmem:[#allocation1] sm:$0xff pattern:$0x75316420]
        %v912 = vld.sshfl [vmem:[#allocation1 + $0x8] sm:$0xff pattern:$0x75316420]
        %v913 = vld.sshfl [vmem:[#allocation1 + $0x10] sm:$0xff pattern:$0x75316420]
        %914 = vrot.lane.b32.xlu0 %v911, 95
        %v915 = vpop.permute.xlu0 %914
        %916 = vrot.lane.b32.xlu0 %v912, 95
        %v917 = vpop.permute.xlu0 %916
        %918 = vrot.lane.b32.xlu0 %v913, 95
        %v919 = vpop.permute.xlu0 %918
        %vm920 = vcmask 777216
        %v921 = vsel %vm920, %v915, %v917
        %v922 = vsel %vm920, %v917, %v919
        %v924 = vsel %vm424, %v905, 0
        %v926 = vsel %vm428, %v921, 0
        %v928 = vsel %vm428, %v922, 0
        %930 = vmatpush.msra.mxu0 0.0
        %931 = vmatpush.msra.mxu0 0.0
        %932 = vmatpush.msra.mxu0 0.0
        %933 = vmatpush.msra.mxu0 0.0
        %934 = vmatpush.msra.mxu0 0.0
        %935 = vmatpush.msra.mxu0 0.0
        %936 = vmatpush.msra.mxu0 0.0
        %937 = vmatpush.msra.mxu0 0.0
        %938 = vmatpush.msra.mxu0 0.0
        %939 = vmatpush.msra.mxu0 0.0
        %940 = vmatpush.msra.mxu0 0.0
        %941 = vmatpush.msra.mxu0 0.0
        %942 = vmatpush.msra.mxu0 0.0
        %943 = vmatpush.msra.mxu0 0.0
        %944 = vmatpush.msra.mxu0 0.0
        %945 = vmatpush.msra.mxu0 %v926
        %946 = vmatmul.f32.gmra.mxu0 %v924
        %v947 = vpop.f32.mrf.mxu0
        %v948 = vadd.f32 0.0, %v947
        %949 = vdwg.mxu0
        %950 = vmatpush.msra.mxu0 0.0
        %951 = vmatpush.msra.mxu0 0.0
        %952 = vmatpush.msra.mxu0 0.0
        %953 = vmatpush.msra.mxu0 0.0
        %954 = vmatpush.msra.mxu0 0.0
        %955 = vmatpush.msra.mxu0 0.0
        %956 = vmatpush.msra.mxu0 0.0
        %957 = vmatpush.msra.mxu0 0.0
        %958 = vmatpush.msra.mxu0 0.0
        %959 = vmatpush.msra.mxu0 0.0
        %960 = vmatpush.msra.mxu0 0.0
        %961 = vmatpush.msra.mxu0 0.0
        %962 = vmatpush.msra.mxu0 0.0
        %963 = vmatpush.msra.mxu0 0.0
        %964 = vmatpush.msra.mxu0 0.0
        %965 = vmatpush.msra.mxu0 %v928
        %966 = vmatmul.f32.gmra.mxu0 %v924
        %v967 = vpop.f32.mrf.mxu0
        %v968 = vadd.f32 0.0, %v967
        %969 = vdwg.mxu0
        %v970 = vadd.f32 %v900, %v948
        %v971 = vadd.f32 %v901, %v968
        %v972 = vld [vmem:[#allocation2] sm:$0xff]
        %v973 = vld [vmem:[#allocation2 + $0x8] sm:$0xf]
        %976 = vst [vmem:[#allocation1] ss:$2 sm:$0xff] %v972
        %s977 = scalar_lea.vmem [#allocation1], 16
        %978 = vst [vmem:[%s977] ss:$2 sm:$0xff] %v973
        %v979 = vld.sshfl [vmem:[#allocation1] sm:$0xff pattern:$0x75316420]
        %v980 = vld.sshfl [vmem:[#allocation1 + $0x8] sm:$0xff pattern:$0x75316420]
        %v981 = vld.sshfl [vmem:[#allocation1 + $0x10] sm:$0xff pattern:$0x75316420]
        %982 = vrot.lane.b32.xlu0 %v979, 94
        %v983 = vpop.permute.xlu0 %982
        %984 = vrot.lane.b32.xlu0 %v980, 94
        %v985 = vpop.permute.xlu0 %984
        %986 = vrot.lane.b32.xlu0 %v981, 94
        %v987 = vpop.permute.xlu0 %986
        %vm988 = vcmask 769024
        %v989 = vsel %vm988, %v983, %v985
        %v990 = vsel %vm988, %v985, %v987
        %v993 = vsel %vm528, %v989, 0.0
        %v994 = vsel %vm529, %v990, 0.0
        %s995 = scalar_lea.vmem %s1, 32
        %v996 = vld [vmem:[%s995] sm:$0xf]
        %v998 = vsel %vm424, %v996, 0
        %v1001 = vsel %vm428, %v993, 0
        %v1004 = vsel %vm428, %v994, 0
        %1006 = vmatpush.msra.mxu0 0.0
        %1007 = vmatpush.msra.mxu0 0.0
        %1008 = vmatpush.msra.mxu0 0.0
        %1009 = vmatpush.msra.mxu0 0.0
        %1010 = vmatpush.msra.mxu0 0.0
        %1011 = vmatpush.msra.mxu0 0.0
        %1012 = vmatpush.msra.mxu0 0.0
        %1013 = vmatpush.msra.mxu0 0.0
        %1014 = vmatpush.msra.mxu0 0.0
        %1015 = vmatpush.msra.mxu0 0.0
        %1016 = vmatpush.msra.mxu0 0.0
        %1017 = vmatpush.msra.mxu0 0.0
        %1018 = vmatpush.msra.mxu0 0.0
        %1019 = vmatpush.msra.mxu0 0.0
        %1020 = vmatpush.msra.mxu0 0.0
        %1021 = vmatpush.msra.mxu0 %v1001
        %1022 = vmatmul.f32.gmra.mxu0 %v998
        %v1023 = vpop.f32.mrf.mxu0
        %v1024 = vadd.f32 0.0, %v1023
        %1025 = vdwg.mxu0
        %1026 = vmatpush.msra.mxu0 0.0
        %1027 = vmatpush.msra.mxu0 0.0
        %1028 = vmatpush.msra.mxu0 0.0
        %1029 = vmatpush.msra.mxu0 0.0
        %1030 = vmatpush.msra.mxu0 0.0
        %1031 = vmatpush.msra.mxu0 0.0
        %1032 = vmatpush.msra.mxu0 0.0
        %1033 = vmatpush.msra.mxu0 0.0
        %1034 = vmatpush.msra.mxu0 0.0
        %1035 = vmatpush.msra.mxu0 0.0
        %1036 = vmatpush.msra.mxu0 0.0
        %1037 = vmatpush.msra.mxu0 0.0
        %1038 = vmatpush.msra.mxu0 0.0
        %1039 = vmatpush.msra.mxu0 0.0
        %1040 = vmatpush.msra.mxu0 0.0
        %1041 = vmatpush.msra.mxu0 %v1004
        %1042 = vmatmul.f32.gmra.mxu0 %v998
        %v1043 = vpop.f32.mrf.mxu0
        %v1044 = vadd.f32 0.0, %v1043
        %1045 = vdwg.mxu0
        %v1046 = vadd.f32 %v970, %v1024
        %v1047 = vadd.f32 %v971, %v1044
        %v1048 = vld [vmem:[%s2] sm:$0xf]
        %1050 = vset.pattern.permute.xlu0 0
        %1051 = vperm.xlu0 %1050, %v1048
        %v1052 = vpop.permute.xlu0 %1051
        %v1054 = vmul.f32 %v1046, %v1052
        %v1055 = vmul.f32 %v1047, %v1052
        %v1056 = vld [vmem:[%s3] sm:$0xf]
        %1058 = vset.pattern.permute.xlu0 0
        %1059 = vperm.xlu0 %1058, %v1056
        %v1060 = vpop.permute.xlu0 %1059
        %v1062 = vadd.f32 %v1054, %v1060
        %v1063 = vadd.f32 %v1055, %v1060
        %v1064 = vmax.f32 %v1062, 0.0
        %v1065 = vmax.f32 %v1063, 0.0
        %1066 = vst.msk [vmem:[#allocation3] sm:$0xf] %vm370, 0.0
        %1067 = vst.msk [vmem:[#allocation3 + $0x8] sm:$0xf] %vm372, 0.0
        %v1070 = vrot.slane %v1065, 4
        %v1071 = vsel %vm428, %v1064, %v1070
        %1072 = vrot.lane.b32.xlu0 %v1071, 17
        %v1073 = vpop.permute.xlu0 %1072
        %v1074 = vrot.slane %v1073, 4
        %v1075 = vsel %vm378, %v1074, %v1073
        %1078 = vst.msk [vmem:[#allocation3] sm:$0xff] %vm384, %v1075
        %1079 = vst.msk [vmem:[#allocation3 + $0x8] sm:$0xf] %vm370, %v1074
        %v1080 = vld [vmem:[#allocation3] sm:$0xff]
        %1082 = vst [vmem:[#allocation1] ss:$2 sm:$0xff] %v1080
        %v1083 = vld.sshfl [vmem:[#allocation1] sm:$0xff pattern:$0x75316420]
        %v1084 = vld.sshfl [vmem:[#allocation1 + $0x8] sm:$0xff pattern:$0x75316420]
        %v1087 = vsel %vm392, %v1083, 0.0
        %v1088 = vsel %vm393, %v1084, 0.0
        %v1089 = vld [vmem:[%s4] sm:$0xf]
        %v1090 = vld [vmem:[#allocation3] sm:$0xff]
        %v1091 = vld [vmem:[#allocation3 + $0x8] sm:$0xf]
        %s1092 = scalar_lea.vmem %s4, 4
        %v1093 = vld [vmem:[%s1092] sm:$0xf]
        %1096 = vst [vmem:[#allocation1] ss:$2 sm:$0xff] %v1090
        %s1097 = scalar_lea.vmem [#allocation1], 16
        %1098 = vst [vmem:[%s1097] ss:$2 sm:$0xff] %v1091
        %v1099 = vld.sshfl [vmem:[#allocation1] sm:$0xff pattern:$0x75316420]
        %v1100 = vld.sshfl [vmem:[#allocation1 + $0x8] sm:$0xff pattern:$0x75316420]
        %v1101 = vld.sshfl [vmem:[#allocation1 + $0x10] sm:$0xff pattern:$0x75316420]
        %1102 = vrot.lane.b32.xlu0 %v1099, 127
        %v1103 = vpop.permute.xlu0 %1102
        %1104 = vrot.lane.b32.xlu0 %v1100, 127
        %v1105 = vpop.permute.xlu0 %1104
        %1106 = vrot.lane.b32.xlu0 %v1101, 127
        %v1107 = vpop.permute.xlu0 %1106
        %v1108 = vsel %vm421, %v1103, %v1105
        %v1109 = vsel %vm421, %v1105, %v1107
        %v1111 = vsel %vm424, %v1093, 0
        %v1113 = vsel %vm428, %v1108, 0
        %v1115 = vsel %vm428, %v1109, 0
        %1117 = vmatpush.msra.mxu0 0.0
        %1118 = vmatpush.msra.mxu0 0.0
        %1119 = vmatpush.msra.mxu0 0.0
        %1120 = vmatpush.msra.mxu0 0.0
        %1121 = vmatpush.msra.mxu0 0.0
        %1122 = vmatpush.msra.mxu0 0.0
        %1123 = vmatpush.msra.mxu0 0.0
        %1124 = vmatpush.msra.mxu0 0.0
        %1125 = vmatpush.msra.mxu0 0.0
        %1126 = vmatpush.msra.mxu0 0.0
        %1127 = vmatpush.msra.mxu0 0.0
        %1128 = vmatpush.msra.mxu0 0.0
        %1129 = vmatpush.msra.mxu0 0.0
        %1130 = vmatpush.msra.mxu0 0.0
        %1131 = vmatpush.msra.mxu0 0.0
        %1132 = vmatpush.msra.mxu0 %v1113
        %1133 = vmatmul.f32.gmra.mxu0 %v1111
        %v1134 = vpop.f32.mrf.mxu0
        %v1135 = vadd.f32 0.0, %v1134
        %1136 = vdwg.mxu0
        %1137 = vmatpush.msra.mxu0 0.0
        %1138 = vmatpush.msra.mxu0 0.0
        %1139 = vmatpush.msra.mxu0 0.0
        %1140 = vmatpush.msra.mxu0 0.0
        %1141 = vmatpush.msra.mxu0 0.0
        %1142 = vmatpush.msra.mxu0 0.0
        %1143 = vmatpush.msra.mxu0 0.0
        %1144 = vmatpush.msra.mxu0 0.0
        %1145 = vmatpush.msra.mxu0 0.0
        %1146 = vmatpush.msra.mxu0 0.0
        %1147 = vmatpush.msra.mxu0 0.0
        %1148 = vmatpush.msra.mxu0 0.0
        %1149 = vmatpush.msra.mxu0 0.0
        %1150 = vmatpush.msra.mxu0 0.0
        %1151 = vmatpush.msra.mxu0 0.0
        %1152 = vmatpush.msra.mxu0 %v1115
        %1153 = vmatmul.f32.gmra.mxu0 %v1111
        %v1154 = vpop.f32.mrf.mxu0
        %v1155 = vadd.f32 0.0, %v1154
        %1156 = vdwg.mxu0
        %v1158 = vsel %vm424, %v1089, 0
        %v1161 = vsel %vm428, %v1087, 0
        %v1164 = vsel %vm428, %v1088, 0
        %1166 = vmatpush.msra.mxu0 0.0
        %1167 = vmatpush.msra.mxu0 0.0
        %1168 = vmatpush.msra.mxu0 0.0
        %1169 = vmatpush.msra.mxu0 0.0
        %1170 = vmatpush.msra.mxu0 0.0
        %1171 = vmatpush.msra.mxu0 0.0
        %1172 = vmatpush.msra.mxu0 0.0
        %1173 = vmatpush.msra.mxu0 0.0
        %1174 = vmatpush.msra.mxu0 0.0
        %1175 = vmatpush.msra.mxu0 0.0
        %1176 = vmatpush.msra.mxu0 0.0
        %1177 = vmatpush.msra.mxu0 0.0
        %1178 = vmatpush.msra.mxu0 0.0
        %1179 = vmatpush.msra.mxu0 0.0
        %1180 = vmatpush.msra.mxu0 0.0
        %1181 = vmatpush.msra.mxu0 %v1161
        %1182 = vmatmul.f32.gmra.mxu0 %v1158
        %v1183 = vpop.f32.mrf.mxu0
        %v1184 = vadd.f32 %v1135, %v1183
        %1185 = vdwg.mxu0
        %1186 = vmatpush.msra.mxu0 0.0
        %1187 = vmatpush.msra.mxu0 0.0
        %1188 = vmatpush.msra.mxu0 0.0
        %1189 = vmatpush.msra.mxu0 0.0
        %1190 = vmatpush.msra.mxu0 0.0
        %1191 = vmatpush.msra.mxu0 0.0
        %1192 = vmatpush.msra.mxu0 0.0
        %1193 = vmatpush.msra.mxu0 0.0
        %1194 = vmatpush.msra.mxu0 0.0
        %1195 = vmatpush.msra.mxu0 0.0
        %1196 = vmatpush.msra.mxu0 0.0
        %1197 = vmatpush.msra.mxu0 0.0
        %1198 = vmatpush.msra.mxu0 0.0
        %1199 = vmatpush.msra.mxu0 0.0
        %1200 = vmatpush.msra.mxu0 0.0
        %1201 = vmatpush.msra.mxu0 %v1164
        %1202 = vmatmul.f32.gmra.mxu0 %v1158
        %v1203 = vpop.f32.mrf.mxu0
        %v1204 = vadd.f32 %v1155, %v1203
        %1205 = vdwg.mxu0
        %v1206 = vld [vmem:[#allocation3] sm:$0xff]
        %v1207 = vld [vmem:[#allocation3 + $0x8] sm:$0xf]
        %1210 = vst [vmem:[#allocation1] ss:$2 sm:$0xff] %v1206
        %s1211 = scalar_lea.vmem [#allocation1], 16
        %1212 = vst [vmem:[%s1211] ss:$2 sm:$0xff] %v1207
        %v1213 = vld.sshfl [vmem:[#allocation1] sm:$0xff pattern:$0x75316420]
        %v1214 = vld.sshfl [vmem:[#allocation1 + $0x8] sm:$0xff pattern:$0x75316420]
        %v1215 = vld.sshfl [vmem:[#allocation1 + $0x10] sm:$0xff pattern:$0x75316420]
        %1216 = vrot.lane.b32.xlu0 %v1213, 126
        %v1217 = vpop.permute.xlu0 %1216
        %1218 = vrot.lane.b32.xlu0 %v1214, 126
        %v1219 = vpop.permute.xlu0 %1218
        %1220 = vrot.lane.b32.xlu0 %v1215, 126
        %v1221 = vpop.permute.xlu0 %1220
        %v1222 = vsel %vm544, %v1217, %v1219
        %v1223 = vsel %vm544, %v1219, %v1221
        %v1226 = vsel %vm528, %v1222, 0.0
        %v1227 = vsel %vm529, %v1223, 0.0
        %s1228 = scalar_lea.vmem %s4, 8
        %v1229 = vld [vmem:[%s1228] sm:$0xf]
        %v1231 = vsel %vm424, %v1229, 0
        %v1234 = vsel %vm428, %v1226, 0
        %v1237 = vsel %vm428, %v1227, 0
        %1239 = vmatpush.msra.mxu0 0.0
        %1240 = vmatpush.msra.mxu0 0.0
        %1241 = vmatpush.msra.mxu0 0.0
        %1242 = vmatpush.msra.mxu0 0.0
        %1243 = vmatpush.msra.mxu0 0.0
        %1244 = vmatpush.msra.mxu0 0.0
        %1245 = vmatpush.msra.mxu0 0.0
        %1246 = vmatpush.msra.mxu0 0.0
        %1247 = vmatpush.msra.mxu0 0.0
        %1248 = vmatpush.msra.mxu0 0.0
        %1249 = vmatpush.msra.mxu0 0.0
        %1250 = vmatpush.msra.mxu0 0.0
        %1251 = vmatpush.msra.mxu0 0.0
        %1252 = vmatpush.msra.mxu0 0.0
        %1253 = vmatpush.msra.mxu0 0.0
        %1254 = vmatpush.msra.mxu0 %v1234
        %1255 = vmatmul.f32.gmra.mxu0 %v1231
        %v1256 = vpop.f32.mrf.mxu0
        %v1257 = vadd.f32 0.0, %v1256
        %1258 = vdwg.mxu0
        %1259 = vmatpush.msra.mxu0 0.0
        %1260 = vmatpush.msra.mxu0 0.0
        %1261 = vmatpush.msra.mxu0 0.0
        %1262 = vmatpush.msra.mxu0 0.0
        %1263 = vmatpush.msra.mxu0 0.0
        %1264 = vmatpush.msra.mxu0 0.0
        %1265 = vmatpush.msra.mxu0 0.0
        %1266 = vmatpush.msra.mxu0 0.0
        %1267 = vmatpush.msra.mxu0 0.0
        %1268 = vmatpush.msra.mxu0 0.0
        %1269 = vmatpush.msra.mxu0 0.0
        %1270 = vmatpush.msra.mxu0 0.0
        %1271 = vmatpush.msra.mxu0 0.0
        %1272 = vmatpush.msra.mxu0 0.0
        %1273 = vmatpush.msra.mxu0 0.0
        %1274 = vmatpush.msra.mxu0 %v1237
        %1275 = vmatmul.f32.gmra.mxu0 %v1231
        %v1276 = vpop.f32.mrf.mxu0
        %v1277 = vadd.f32 0.0, %v1276
        %1278 = vdwg.mxu0
        %v1279 = vadd.f32 %v1184, %v1257
        %v1280 = vadd.f32 %v1204, %v1277
        %v1281 = vld [vmem:[#allocation3] sm:$0xff]
        %v1282 = vld [vmem:[#allocation3 + $0x8] sm:$0xf]
        %1285 = vst [vmem:[#allocation1] ss:$2 sm:$0xff] %v1281
        %s1286 = scalar_lea.vmem [#allocation1], 16
        %1287 = vst [vmem:[%s1286] ss:$2 sm:$0xff] %v1282
        %v1288 = vld.sshfl [vmem:[#allocation1] sm:$0xff pattern:$0x75316420]
        %v1289 = vld.sshfl [vmem:[#allocation1 + $0x8] sm:$0xff pattern:$0x75316420]
        %v1290 = vld.sshfl [vmem:[#allocation1 + $0x10] sm:$0xff pattern:$0x75316420]
        %1291 = vrot.lane.b32.xlu0 %v1288, 112
        %v1292 = vpop.permute.xlu0 %1291
        %1293 = vrot.lane.b32.xlu0 %v1289, 112
        %v1294 = vpop.permute.xlu0 %1293
        %1295 = vrot.lane.b32.xlu0 %v1290, 112
        %v1296 = vpop.permute.xlu0 %1295
        %v1297 = vsel %vm620, %v1292, %v1294
        %v1298 = vsel %vm620, %v1294, %v1296
        %v1301 = vsel %vm392, %v1297, 0.0
        %v1302 = vsel %vm393, %v1298, 0.0
        %s1303 = scalar_lea.vmem %s4, 12
        %v1304 = vld [vmem:[%s1303] sm:$0xf]
        %v1306 = vsel %vm424, %v1304, 0
        %v1309 = vsel %vm428, %v1301, 0
        %v1312 = vsel %vm428, %v1302, 0
        %1314 = vmatpush.msra.mxu0 0.0
        %1315 = vmatpush.msra.mxu0 0.0
        %1316 = vmatpush.msra.mxu0 0.0
        %1317 = vmatpush.msra.mxu0 0.0
        %1318 = vmatpush.msra.mxu0 0.0
        %1319 = vmatpush.msra.mxu0 0.0
        %1320 = vmatpush.msra.mxu0 0.0
        %1321 = vmatpush.msra.mxu0 0.0
        %1322 = vmatpush.msra.mxu0 0.0
        %1323 = vmatpush.msra.mxu0 0.0
        %1324 = vmatpush.msra.mxu0 0.0
        %1325 = vmatpush.msra.mxu0 0.0
        %1326 = vmatpush.msra.mxu0 0.0
        %1327 = vmatpush.msra.mxu0 0.0
        %1328 = vmatpush.msra.mxu0 0.0
        %1329 = vmatpush.msra.mxu0 %v1309
        %1330 = vmatmul.f32.gmra.mxu0 %v1306
        %v1331 = vpop.f32.mrf.mxu0
        %v1332 = vadd.f32 0.0, %v1331
        %1333 = vdwg.mxu0
        %1334 = vmatpush.msra.mxu0 0.0
        %1335 = vmatpush.msra.mxu0 0.0
        %1336 = vmatpush.msra.mxu0 0.0
        %1337 = vmatpush.msra.mxu0 0.0
        %1338 = vmatpush.msra.mxu0 0.0
        %1339 = vmatpush.msra.mxu0 0.0
        %1340 = vmatpush.msra.mxu0 0.0
        %1341 = vmatpush.msra.mxu0 0.0
        %1342 = vmatpush.msra.mxu0 0.0
        %1343 = vmatpush.msra.mxu0 0.0
        %1344 = vmatpush.msra.mxu0 0.0
        %1345 = vmatpush.msra.mxu0 0.0
        %1346 = vmatpush.msra.mxu0 0.0
        %1347 = vmatpush.msra.mxu0 0.0
        %1348 = vmatpush.msra.mxu0 0.0
        %1349 = vmatpush.msra.mxu0 %v1312
        %1350 = vmatmul.f32.gmra.mxu0 %v1306
        %v1351 = vpop.f32.mrf.mxu0
        %v1352 = vadd.f32 0.0, %v1351
        %1353 = vdwg.mxu0
        %v1354 = vadd.f32 %v1279, %v1332
        %v1355 = vadd.f32 %v1280, %v1352
        %v1356 = vld [vmem:[#allocation3] sm:$0xff]
        %v1357 = vld [vmem:[#allocation3 + $0x8] sm:$0xf]
        %s1358 = scalar_lea.vmem %s4, 16
        %v1359 = vld [vmem:[%s1358] sm:$0xf]
        %1362 = vst [vmem:[#allocation1] ss:$2 sm:$0xff] %v1356
        %s1363 = scalar_lea.vmem [#allocation1], 16
        %1364 = vst [vmem:[%s1363] ss:$2 sm:$0xff] %v1357
        %v1365 = vld.sshfl [vmem:[#allocation1] sm:$0xff pattern:$0x75316420]
        %v1366 = vld.sshfl [vmem:[#allocation1 + $0x8] sm:$0xff pattern:$0x75316420]
        %v1367 = vld.sshfl [vmem:[#allocation1 + $0x10] sm:$0xff pattern:$0x75316420]
        %1368 = vrot.lane.b32.xlu0 %v1365, 111
        %v1369 = vpop.permute.xlu0 %1368
        %1370 = vrot.lane.b32.xlu0 %v1366, 111
        %v1371 = vpop.permute.xlu0 %1370
        %1372 = vrot.lane.b32.xlu0 %v1367, 111
        %v1373 = vpop.permute.xlu0 %1372
        %v1374 = vsel %vm698, %v1369, %v1371
        %v1375 = vsel %vm698, %v1371, %v1373
        %v1377 = vsel %vm424, %v1359, 0
        %v1379 = vsel %vm428, %v1374, 0
        %v1381 = vsel %vm428, %v1375, 0
        %1383 = vmatpush.msra.mxu0 0.0
        %1384 = vmatpush.msra.mxu0 0.0
        %1385 = vmatpush.msra.mxu0 0.0
        %1386 = vmatpush.msra.mxu0 0.0
        %1387 = vmatpush.msra.mxu0 0.0
        %1388 = vmatpush.msra.mxu0 0.0
        %1389 = vmatpush.msra.mxu0 0.0
        %1390 = vmatpush.msra.mxu0 0.0
        %1391 = vmatpush.msra.mxu0 0.0
        %1392 = vmatpush.msra.mxu0 0.0
        %1393 = vmatpush.msra.mxu0 0.0
        %1394 = vmatpush.msra.mxu0 0.0
        %1395 = vmatpush.msra.mxu0 0.0
        %1396 = vmatpush.msra.mxu0 0.0
        %1397 = vmatpush.msra.mxu0 0.0
        %1398 = vmatpush.msra.mxu0 %v1379
        %1399 = vmatmul.f32.gmra.mxu0 %v1377
        %v1400 = vpop.f32.mrf.mxu0
        %v1401 = vadd.f32 0.0, %v1400
        %1402 = vdwg.mxu0
        %1403 = vmatpush.msra.mxu0 0.0
        %1404 = vmatpush.msra.mxu0 0.0
        %1405 = vmatpush.msra.mxu0 0.0
        %1406 = vmatpush.msra.mxu0 0.0
        %1407 = vmatpush.msra.mxu0 0.0
        %1408 = vmatpush.msra.mxu0 0.0
        %1409 = vmatpush.msra.mxu0 0.0
        %1410 = vmatpush.msra.mxu0 0.0
        %1411 = vmatpush.msra.mxu0 0.0
        %1412 = vmatpush.msra.mxu0 0.0
        %1413 = vmatpush.msra.mxu0 0.0
        %1414 = vmatpush.msra.mxu0 0.0
        %1415 = vmatpush.msra.mxu0 0.0
        %1416 = vmatpush.msra.mxu0 0.0
        %1417 = vmatpush.msra.mxu0 0.0
        %1418 = vmatpush.msra.mxu0 %v1381
        %1419 = vmatmul.f32.gmra.mxu0 %v1377
        %v1420 = vpop.f32.mrf.mxu0
        %v1421 = vadd.f32 0.0, %v1420
        %1422 = vdwg.mxu0
        %v1423 = vadd.f32 %v1354, %v1401
        %v1424 = vadd.f32 %v1355, %v1421
        %v1425 = vld [vmem:[#allocation3] sm:$0xff]
        %v1426 = vld [vmem:[#allocation3 + $0x8] sm:$0xf]
        %1429 = vst [vmem:[#allocation1] ss:$2 sm:$0xff] %v1425
        %s1430 = scalar_lea.vmem [#allocation1], 16
        %1431 = vst [vmem:[%s1430] ss:$2 sm:$0xff] %v1426
        %v1432 = vld.sshfl [vmem:[#allocation1] sm:$0xff pattern:$0x75316420]
        %v1433 = vld.sshfl [vmem:[#allocation1 + $0x8] sm:$0xff pattern:$0x75316420]
        %v1434 = vld.sshfl [vmem:[#allocation1 + $0x10] sm:$0xff pattern:$0x75316420]
        %1435 = vrot.lane.b32.xlu0 %v1432, 110
        %v1436 = vpop.permute.xlu0 %1435
        %1437 = vrot.lane.b32.xlu0 %v1433, 110
        %v1438 = vpop.permute.xlu0 %1437
        %1439 = vrot.lane.b32.xlu0 %v1434, 110
        %v1440 = vpop.permute.xlu0 %1439
        %v1441 = vsel %vm766, %v1436, %v1438
        %v1442 = vsel %vm766, %v1438, %v1440
        %v1445 = vsel %vm528, %v1441, 0.0
        %v1446 = vsel %vm529, %v1442, 0.0
        %s1447 = scalar_lea.vmem %s4, 20
        %v1448 = vld [vmem:[%s1447] sm:$0xf]
        %v1450 = vsel %vm424, %v1448, 0
        %v1453 = vsel %vm428, %v1445, 0
        %v1456 = vsel %vm428, %v1446, 0
        %1458 = vmatpush.msra.mxu0 0.0
        %1459 = vmatpush.msra.mxu0 0.0
        %1460 = vmatpush.msra.mxu0 0.0
        %1461 = vmatpush.msra.mxu0 0.0
        %1462 = vmatpush.msra.mxu0 0.0
        %1463 = vmatpush.msra.mxu0 0.0
        %1464 = vmatpush.msra.mxu0 0.0
        %1465 = vmatpush.msra.mxu0 0.0
        %1466 = vmatpush.msra.mxu0 0.0
        %1467 = vmatpush.msra.mxu0 0.0
        %1468 = vmatpush.msra.mxu0 0.0
        %1469 = vmatpush.msra.mxu0 0.0
        %1470 = vmatpush.msra.mxu0 0.0
        %1471 = vmatpush.msra.mxu0 0.0
        %1472 = vmatpush.msra.mxu0 0.0
        %1473 = vmatpush.msra.mxu0 %v1453
        %1474 = vmatmul.f32.gmra.mxu0 %v1450
        %v1475 = vpop.f32.mrf.mxu0
        %v1476 = vadd.f32 0.0, %v1475
        %1477 = vdwg.mxu0
        %1478 = vmatpush.msra.mxu0 0.0
        %1479 = vmatpush.msra.mxu0 0.0
        %1480 = vmatpush.msra.mxu0 0.0
        %1481 = vmatpush.msra.mxu0 0.0
        %1482 = vmatpush.msra.mxu0 0.0
        %1483 = vmatpush.msra.mxu0 0.0
        %1484 = vmatpush.msra.mxu0 0.0
        %1485 = vmatpush.msra.mxu0 0.0
        %1486 = vmatpush.msra.mxu0 0.0
        %1487 = vmatpush.msra.mxu0 0.0
        %1488 = vmatpush.msra.mxu0 0.0
        %1489 = vmatpush.msra.mxu0 0.0
        %1490 = vmatpush.msra.mxu0 0.0
        %1491 = vmatpush.msra.mxu0 0.0
        %1492 = vmatpush.msra.mxu0 0.0
        %1493 = vmatpush.msra.mxu0 %v1456
        %1494 = vmatmul.f32.gmra.mxu0 %v1450
        %v1495 = vpop.f32.mrf.mxu0
        %v1496 = vadd.f32 0.0, %v1495
        %1497 = vdwg.mxu0
        %v1498 = vadd.f32 %v1423, %v1476
        %v1499 = vadd.f32 %v1424, %v1496
        %v1500 = vld [vmem:[#allocation3] sm:$0xff]
        %v1501 = vld [vmem:[#allocation3 + $0x8] sm:$0xf]
        %1504 = vst [vmem:[#allocation1] ss:$2 sm:$0xff] %v1500
        %s1505 = scalar_lea.vmem [#allocation1], 16
        %1506 = vst [vmem:[%s1505] ss:$2 sm:$0xff] %v1501
        %v1507 = vld.sshfl [vmem:[#allocation1] sm:$0xff pattern:$0x75316420]
        %v1508 = vld.sshfl [vmem:[#allocation1 + $0x8] sm:$0xff pattern:$0x75316420]
        %v1509 = vld.sshfl [vmem:[#allocation1 + $0x10] sm:$0xff pattern:$0x75316420]
        %1510 = vrot.lane.b32.xlu0 %v1507, 96
        %v1511 = vpop.permute.xlu0 %1510
        %1512 = vrot.lane.b32.xlu0 %v1508, 96
        %v1513 = vpop.permute.xlu0 %1512
        %1514 = vrot.lane.b32.xlu0 %v1509, 96
        %v1515 = vpop.permute.xlu0 %1514
        %v1516 = vsel %vm842, %v1511, %v1513
        %v1517 = vsel %vm842, %v1513, %v1515
        %v1520 = vsel %vm392, %v1516, 0.0
        %v1521 = vsel %vm393, %v1517, 0.0
        %s1522 = scalar_lea.vmem %s4, 24
        %v1523 = vld [vmem:[%s1522] sm:$0xf]
        %v1525 = vsel %vm424, %v1523, 0
        %v1528 = vsel %vm428, %v1520, 0
        %v1531 = vsel %vm428, %v1521, 0
        %1533 = vmatpush.msra.mxu0 0.0
        %1534 = vmatpush.msra.mxu0 0.0
        %1535 = vmatpush.msra.mxu0 0.0
        %1536 = vmatpush.msra.mxu0 0.0
        %1537 = vmatpush.msra.mxu0 0.0
        %1538 = vmatpush.msra.mxu0 0.0
        %1539 = vmatpush.msra.mxu0 0.0
        %1540 = vmatpush.msra.mxu0 0.0
        %1541 = vmatpush.msra.mxu0 0.0
        %1542 = vmatpush.msra.mxu0 0.0
        %1543 = vmatpush.msra.mxu0 0.0
        %1544 = vmatpush.msra.mxu0 0.0
        %1545 = vmatpush.msra.mxu0 0.0
        %1546 = vmatpush.msra.mxu0 0.0
        %1547 = vmatpush.msra.mxu0 0.0
        %1548 = vmatpush.msra.mxu0 %v1528
        %1549 = vmatmul.f32.gmra.mxu0 %v1525
        %v1550 = vpop.f32.mrf.mxu0
        %v1551 = vadd.f32 0.0, %v1550
        %1552 = vdwg.mxu0
        %1553 = vmatpush.msra.mxu0 0.0
        %1554 = vmatpush.msra.mxu0 0.0
        %1555 = vmatpush.msra.mxu0 0.0
        %1556 = vmatpush.msra.mxu0 0.0
        %1557 = vmatpush.msra.mxu0 0.0
        %1558 = vmatpush.msra.mxu0 0.0
        %1559 = vmatpush.msra.mxu0 0.0
        %1560 = vmatpush.msra.mxu0 0.0
        %1561 = vmatpush.msra.mxu0 0.0
        %1562 = vmatpush.msra.mxu0 0.0
        %1563 = vmatpush.msra.mxu0 0.0
        %1564 = vmatpush.msra.mxu0 0.0
        %1565 = vmatpush.msra.mxu0 0.0
        %1566 = vmatpush.msra.mxu0 0.0
        %1567 = vmatpush.msra.mxu0 0.0
        %1568 = vmatpush.msra.mxu0 %v1531
        %1569 = vmatmul.f32.gmra.mxu0 %v1525
        %v1570 = vpop.f32.mrf.mxu0
        %v1571 = vadd.f32 0.0, %v1570
        %1572 = vdwg.mxu0
        %v1573 = vadd.f32 %v1498, %v1551
        %v1574 = vadd.f32 %v1499, %v1571
        %v1575 = vld [vmem:[#allocation3] sm:$0xff]
        %v1576 = vld [vmem:[#allocation3 + $0x8] sm:$0xf]
        %s1577 = scalar_lea.vmem %s4, 28
        %v1578 = vld [vmem:[%s1577] sm:$0xf]
        %1581 = vst [vmem:[#allocation1] ss:$2 sm:$0xff] %v1575
        %s1582 = scalar_lea.vmem [#allocation1], 16
        %1583 = vst [vmem:[%s1582] ss:$2 sm:$0xff] %v1576
        %v1584 = vld.sshfl [vmem:[#allocation1] sm:$0xff pattern:$0x75316420]
        %v1585 = vld.sshfl [vmem:[#allocation1 + $0x8] sm:$0xff pattern:$0x75316420]
        %v1586 = vld.sshfl [vmem:[#allocation1 + $0x10] sm:$0xff pattern:$0x75316420]
        %1587 = vrot.lane.b32.xlu0 %v1584, 95
        %v1588 = vpop.permute.xlu0 %1587
        %1589 = vrot.lane.b32.xlu0 %v1585, 95
        %v1590 = vpop.permute.xlu0 %1589
        %1591 = vrot.lane.b32.xlu0 %v1586, 95
        %v1592 = vpop.permute.xlu0 %1591
        %v1593 = vsel %vm920, %v1588, %v1590
        %v1594 = vsel %vm920, %v1590, %v1592
        %v1596 = vsel %vm424, %v1578, 0
        %v1598 = vsel %vm428, %v1593, 0
        %v1600 = vsel %vm428, %v1594, 0
        %1602 = vmatpush.msra.mxu0 0.0
        %1603 = vmatpush.msra.mxu0 0.0
        %1604 = vmatpush.msra.mxu0 0.0
        %1605 = vmatpush.msra.mxu0 0.0
        %1606 = vmatpush.msra.mxu0 0.0
        %1607 = vmatpush.msra.mxu0 0.0
        %1608 = vmatpush.msra.mxu0 0.0
        %1609 = vmatpush.msra.mxu0 0.0
        %1610 = vmatpush.msra.mxu0 0.0
        %1611 = vmatpush.msra.mxu0 0.0
        %1612 = vmatpush.msra.mxu0 0.0
        %1613 = vmatpush.msra.mxu0 0.0
        %1614 = vmatpush.msra.mxu0 0.0
        %1615 = vmatpush.msra.mxu0 0.0
        %1616 = vmatpush.msra.mxu0 0.0
        %1617 = vmatpush.msra.mxu0 %v1598
        %1618 = vmatmul.f32.gmra.mxu0 %v1596
        %v1619 = vpop.f32.mrf.mxu0
        %v1620 = vadd.f32 0.0, %v1619
        %1621 = vdwg.mxu0
        %1622 = vmatpush.msra.mxu0 0.0
        %1623 = vmatpush.msra.mxu0 0.0
        %1624 = vmatpush.msra.mxu0 0.0
        %1625 = vmatpush.msra.mxu0 0.0
        %1626 = vmatpush.msra.mxu0 0.0
        %1627 = vmatpush.msra.mxu0 0.0
        %1628 = vmatpush.msra.mxu0 0.0
        %1629 = vmatpush.msra.mxu0 0.0
        %1630 = vmatpush.msra.mxu0 0.0
        %1631 = vmatpush.msra.mxu0 0.0
        %1632 = vmatpush.msra.mxu0 0.0
        %1633 = vmatpush.msra.mxu0 0.0
        %1634 = vmatpush.msra.mxu0 0.0
        %1635 = vmatpush.msra.mxu0 0.0
        %1636 = vmatpush.msra.mxu0 0.0
        %1637 = vmatpush.msra.mxu0 %v1600
        %1638 = vmatmul.f32.gmra.mxu0 %v1596
        %v1639 = vpop.f32.mrf.mxu0
        %v1640 = vadd.f32 0.0, %v1639
        %1641 = vdwg.mxu0
        %v1642 = vadd.f32 %v1573, %v1620
        %v1643 = vadd.f32 %v1574, %v1640
        %v1644 = vld [vmem:[#allocation3] sm:$0xff]
        %v1645 = vld [vmem:[#allocation3 + $0x8] sm:$0xf]
        %1648 = vst [vmem:[#allocation1] ss:$2 sm:$0xff] %v1644
        %s1649 = scalar_lea.vmem [#allocation1], 16
        %1650 = vst [vmem:[%s1649] ss:$2 sm:$0xff] %v1645
        %v1651 = vld.sshfl [vmem:[#allocation1] sm:$0xff pattern:$0x75316420]
        %v1652 = vld.sshfl [vmem:[#allocation1 + $0x8] sm:$0xff pattern:$0x75316420]
        %v1653 = vld.sshfl [vmem:[#allocation1 + $0x10] sm:$0xff pattern:$0x75316420]
        %1654 = vrot.lane.b32.xlu0 %v1651, 94
        %v1655 = vpop.permute.xlu0 %1654
        %1656 = vrot.lane.b32.xlu0 %v1652, 94
        %v1657 = vpop.permute.xlu0 %1656
        %1658 = vrot.lane.b32.xlu0 %v1653, 94
        %v1659 = vpop.permute.xlu0 %1658
        %v1660 = vsel %vm988, %v1655, %v1657
        %v1661 = vsel %vm988, %v1657, %v1659
        %v1664 = vsel %vm528, %v1660, 0.0
        %v1665 = vsel %vm529, %v1661, 0.0
        %s1666 = scalar_lea.vmem %s4, 32
        %v1667 = vld [vmem:[%s1666] sm:$0xf]
        %v1669 = vsel %vm424, %v1667, 0
        %v1672 = vsel %vm428, %v1664, 0
        %v1675 = vsel %vm428, %v1665, 0
        %1677 = vmatpush.msra.mxu0 0.0
        %1678 = vmatpush.msra.mxu0 0.0
        %1679 = vmatpush.msra.mxu0 0.0
        %1680 = vmatpush.msra.mxu0 0.0
        %1681 = vmatpush.msra.mxu0 0.0
        %1682 = vmatpush.msra.mxu0 0.0
        %1683 = vmatpush.msra.mxu0 0.0
        %1684 = vmatpush.msra.mxu0 0.0
        %1685 = vmatpush.msra.mxu0 0.0
        %1686 = vmatpush.msra.mxu0 0.0
        %1687 = vmatpush.msra.mxu0 0.0
        %1688 = vmatpush.msra.mxu0 0.0
        %1689 = vmatpush.msra.mxu0 0.0
        %1690 = vmatpush.msra.mxu0 0.0
        %1691 = vmatpush.msra.mxu0 0.0
        %1692 = vmatpush.msra.mxu0 %v1672
        %1693 = vmatmul.f32.gmra.mxu0 %v1669
        %v1694 = vpop.f32.mrf.mxu0
        %v1695 = vadd.f32 0.0, %v1694
        %1696 = vdwg.mxu0
        %1697 = vmatpush.msra.mxu0 0.0
        %1698 = vmatpush.msra.mxu0 0.0
        %1699 = vmatpush.msra.mxu0 0.0
        %1700 = vmatpush.msra.mxu0 0.0
        %1701 = vmatpush.msra.mxu0 0.0
        %1702 = vmatpush.msra.mxu0 0.0
        %1703 = vmatpush.msra.mxu0 0.0
        %1704 = vmatpush.msra.mxu0 0.0
        %1705 = vmatpush.msra.mxu0 0.0
        %1706 = vmatpush.msra.mxu0 0.0
        %1707 = vmatpush.msra.mxu0 0.0
        %1708 = vmatpush.msra.mxu0 0.0
        %1709 = vmatpush.msra.mxu0 0.0
        %1710 = vmatpush.msra.mxu0 0.0
        %1711 = vmatpush.msra.mxu0 0.0
        %1712 = vmatpush.msra.mxu0 %v1675
        %1713 = vmatmul.f32.gmra.mxu0 %v1669
        %v1714 = vpop.f32.mrf.mxu0
        %v1715 = vadd.f32 0.0, %v1714
        %1716 = vdwg.mxu0
        %v1717 = vadd.f32 %v1642, %v1695
        %v1718 = vadd.f32 %v1643, %v1715
        %v1719 = vld [vmem:[%s5] sm:$0xf]
        %1721 = vset.pattern.permute.xlu0 0
        %1722 = vperm.xlu0 %1721, %v1719
        %v1723 = vpop.permute.xlu0 %1722
        %v1725 = vmul.f32 %v1717, %v1723
        %v1726 = vmul.f32 %v1718, %v1723
        %v1727 = vld [vmem:[%s6] sm:$0xf]
        %1729 = vset.pattern.permute.xlu0 0
        %1730 = vperm.xlu0 %1729, %v1727
        %v1731 = vpop.permute.xlu0 %1730
        %v1733 = vadd.f32 %v1725, %v1731
        %v1734 = vadd.f32 %v1726, %v1731
        %1735 = vst [vmem:[#allocation1] ss:$2 sm:$0xff] %v342
        %v1736 = vld.sshfl [vmem:[#allocation1] sm:$0xff pattern:$0x75316420]
        %v1737 = vld.sshfl [vmem:[#allocation1 + $0x8] sm:$0xff pattern:$0x75316420]
        %v1740 = vsel %vm428, %v1736, 0.0
        %v1741 = vsel %vm428, %v1737, 0.0
        %v1742 = vadd.f32 %v1740, %v1741
        %1743 = vadd.xlane.f32.xlu0 %v1742
        %v1744 = vpop.xlane.xlu0 %1743
        %v1745 = vmul.f32 %v1744, 0.00390625
        %v1746 = vsel %vm428, %v1733, 0.0
        %v1747 = vsel %vm428, %v1734, 0.0
        %v1748 = vadd.f32 %v1746, %v1747
        %1749 = vadd.xlane.f32.xlu0 %v1748
        %v1750 = vpop.xlane.xlu0 %1749
        %v1751 = vmul.f32 %v1750, 0.00390625
        %v1752 = vadd.f32 %v1745, %v1751
        %v1753 = vmax.f32 %v1752, 0.0
        %v1754 = vld [vmem:[%s7] sm:$0xf]
        %v1756 = vsel %vm424, %v1754, 0
        %v1759 = vsel %vm428, %v1753, 0
        %1761 = vmatpush.msra.mxu0 0.0
        %1762 = vmatpush.msra.mxu0 0.0
        %1763 = vmatpush.msra.mxu0 0.0
        %1764 = vmatpush.msra.mxu0 0.0
        %1765 = vmatpush.msra.mxu0 0.0
        %1766 = vmatpush.msra.mxu0 0.0
        %1767 = vmatpush.msra.mxu0 0.0
        %1768 = vmatpush.msra.mxu0 0.0
        %1769 = vmatpush.msra.mxu0 0.0
        %1770 = vmatpush.msra.mxu0 0.0
        %1771 = vmatpush.msra.mxu0 0.0
        %1772 = vmatpush.msra.mxu0 0.0
        %1773 = vmatpush.msra.mxu0 0.0
        %1774 = vmatpush.msra.mxu0 0.0
        %1775 = vmatpush.msra.mxu0 0.0
        %1776 = vmatpush.msra.mxu0 %v1759
        %1777 = vmatmul.f32.gmra.mxu0 %v1756
        %v1778 = vpop.f32.mrf.mxu0
        %v1779 = vadd.f32 0.0, %v1778
        %1780 = vdwg.mxu0
        %v1781 = vsub.f32 0.0, %v1779
        %v1782 = vmul.f32 %v1781, 1.442695
        %v1783 = vpow.pop %v1782
        %v1784 = vadd.f32 %v1783, 1.0
        %v1785 = vrcp.pop %v1784
        %v1786 = vmul.f32 %v1784, %v1785
        %v1787 = vsub.f32 1.0, %v1786
        %v1788 = vmul.f32 %v1785, %v1787
        %v1789 = vadd.f32 %v1785, %v1788
        %vm1790 = vweird.f32 %v1784
        %vm1791 = vweird.f32 %v1785
        %vm1792 = vmor %vm1790, %vm1791
        %v1793 = vsel %vm1792, %v1785, %v1789
        %v1794 = vand.u32 2147483647, %v1784
        %vm1795 = vcmp.eq.f32.partialorder %v1794, 8.507059e+37
        %v1796 = vand.u32 %v1784, 2147483648
        %v1797 = vor.u32 1.1754944e-38, %v1796
        %v1798 = vsel %vm1795, %v1797, %v1793
        %v1799 = vmul.f32 1.0, %v1798
        %1801 = vset.pattern.permute.xlu0 0
        %1802 = vperm.xlu0 %1801, %v1799
        %v1803 = vpop.permute.xlu0 %1802
        %v1805 = vunpack.c.l.s4 839922192
        %v1806 = vunpack.c.0.s8 %v1805
        %v1807 = vperm.slane %v1803, %v1806
        %v1809 = vmul.f32 %v342, %v1807
        %1811 = vst [vmem:[#allocation1] ss:$2 sm:$0xff] %v1809
        %v1812 = vld.sshfl [vmem:[#allocation1] sm:$0xff pattern:$0x75316420]
        %v1813 = vld.sshfl [vmem:[#allocation1 + $0x8] sm:$0xff pattern:$0x75316420]
        %v1816 = vadd.f32 %v1733, %v1812
        %v1817 = vadd.f32 %v1734, %v1813
        %v1818 = vmax.f32 %v1816, 0.0
        %v1819 = vmax.f32 %v1817, 0.0
        %v1822 = vrot.slane %v1819, 4
        %v1823 = vsel %vm428, %v1818, %v1822
        %1825 = vst [vmem:[%s326] sm:$0xff] %v1823
        %vm1826 = vcmask 3072
        %1827 = vst.msk [vmem:[%s341] sm:$0xf] %vm1826, %v1779
        %s1828 = sand.u32 %s205, 1
        %s1829 = scalar_lea.sflag [#allocation5], %s1828
        %s1830 = sand.u32 %s205, 1
        %s1831 = smul.addr %s1830, 8
        %s1832 = scalar_lea.vmem [#allocation4], %s1831
        %p1833 = scmp.lt.s32.totalorder %s24, 1
        %s1834 = scalar_select %p1833, %s24, 1
        %s1835 = smul.addr %s1834, 4
        %s1836 = scalar_lea.vmem %s9, %s1835
        // Predicated region
        $region53: #{tpu_custom_call.1} parent=51 // pred_check
          %p1837 = pneg %p215
        $region54: #{tpu_custom_call.1} parent=51 // pred_check_branch
          %1839 = sbr.rel (%p1837) target = $region56
        $region55: #{tpu_custom_call.1} parent=51 // pred_region
          %1841 = vsyncadd %s1829, 0
          %s1842 = smul.addr %s24, 2
          %s1843 = smul.addr %s1842, 4
          %s1844 = scalar_lea.hbm %s8, %s1843
          %s1846 = sshll.u32 %s1832, 4
          %s1847 = int_to_ptr.vmem [resolvable:$true] %s1846
          %s1848 = sshll.u32 %s1844, 4
          %s1849 = int_to_ptr.hbm [resolvable:$true] %s1848
          %1851 = dma.vmem_to_hbm [thread:$0]  %s1847, 128, %s1849, %s1829
        $region56: #{tpu_custom_call.1} parent=51 // pred_fallthru
          _
        // Predicated region
        $region57: #{tpu_custom_call.1} parent=51 // pred_check
          %p1852 = pneg %p241
        $region58: #{tpu_custom_call.1} parent=51 // pred_check_branch
          %1854 = sbr.rel (%p1852) target = $region60
        $region59: #{tpu_custom_call.1} parent=51 // pred_region
          _
        $region60: #{tpu_custom_call.1} parent=51 // pred_fallthru
          _
      $region52: #{tpu_custom_call.1} parent=5 // pred_fallthru
        _
      %p1855 = scmp.le.s32.totalorder 2, %s19
      // Predicated region
      $region61: #{tpu_custom_call.1} parent=5 // pred_check
        %p1856 = pneg %p1855
      $region62: #{tpu_custom_call.1} parent=5 // pred_check_branch
        %1858 = sbr.rel (%p1856) target = $region64
      $region63: #{tpu_custom_call.1} parent=5 // pred_region
        %s1859 = ssub.s32 %s19, 2
        // Predicated region
        $region65: #{tpu_custom_call.1} parent=63 // pred_check
          %p1860 = pneg %p221
        $region66: #{tpu_custom_call.1} parent=63 // pred_check_branch
          %1862 = sbr.rel (%p1860) target = $region68
        $region67: #{tpu_custom_call.1} parent=63 // pred_region
          %s1863 = sand.u32 %s206, 1
          %s1864 = scalar_lea.sflag [#allocation5], %s1863
          %s1865 = sand.u32 %s206, 1
          %s1866 = smul.addr %s1865, 8
          %s1867 = scalar_lea.vmem [#allocation4], %s1866
          %1869 = dma.done %s1864, 128
        $region68: #{tpu_custom_call.1} parent=63 // pred_fallthru
          _
        // Predicated region
        $region69: #{tpu_custom_call.1} parent=63 // pred_check
          %p1870 = pneg %p247
        $region70: #{tpu_custom_call.1} parent=63 // pred_check_branch
          %1872 = sbr.rel (%p1870) target = $region72
        $region71: #{tpu_custom_call.1} parent=63 // pred_region
          %p1873 = scmp.lt.s32.totalorder %s25, 1
          %s1874 = scalar_select %p1873, %s25, 1
          %s1875 = smul.addr %s1874, 4
          %s1876 = scalar_lea.vmem %s9, %s1875
        $region72: #{tpu_custom_call.1} parent=63 // pred_fallthru
          _
      $region64: #{tpu_custom_call.1} parent=5 // pred_fallthru
        _
    $region6: #{tpu_custom_call.1} parent=1 // loop_footer
      %s23 = sadd.s32 1, %s19
    $region7: #{tpu_custom_call.1} parent=1 // loop_footer_branch
      %18 = sbr.rel target = $region3
    $region8: #{tpu_custom_call.1} parent=1 // loop_exit
      _
    %1877 = vsyncpa [#allocation5], 1
    %s1878 = scalar_lea.sflag [#allocation5], 1
    %1879 = vsyncpa %s1878, 1

</llo_original>
